<compile_context>
chip_gen: v7x
topology: tpu7x:2x2x1
jax: 0.10.0
libtpu: 0.0.40
codegen_flags: <defaults>
</compile_context>

<pallas_src>
import numpy as np
import jax
import jax.numpy as jnp
from jax.experimental import pallas as pl
from jax.experimental.pallas import tpu as pltpu


def _mdvad_loss_kernel(x_ref, noise_ref, c12_ref, cond_ref, w_ref, wc_ref,
                       sse_m_ref, sse_t_ref, accm_ref, acct_ref):
    s = pl.program_id(1)

    # init this core's tiny accumulators at the start of its row slice
    @pl.when(s == 0)
    def _():
        accm_ref[...] = jnp.zeros_like(accm_ref)
        acct_ref[...] = jnp.zeros_like(acct_ref)

    x = x_ref[...].astype(jnp.float32)      # bf16 stream -> f32 perturb math
    noise = noise_ref[...]                  # f32 (MSE target precision)
    c1 = c12_ref[:, 0:1]                    # sqrt_alphas_cumprod[t]
    c2 = c12_ref[:, 1:2]                    # sqrt_one_minus_alphas_cumprod[t]

    # perturb_prod in f32, cast to bf16 only for the MXU LHS
    px = (c1 * x + c2 * noise).astype(jnp.bfloat16)

    # TODO(synk): UnetModel's architecture is not given in the reference
    # source; a deterministic linear surrogate eps_hat = px @ W + cond @ Wc
    # stands in for model(perturbed_x, t, c).
    # Fused prediction for both branches: (TN, 2F)
    #   [pred_mot | pred_text] = px @ [W_mot | W_text]
    #                          + [mot | text] @ blockdiag(Wc_mot, Wc_text)
    pred = (jnp.dot(px, w_ref[...], preferred_element_type=jnp.float32)
            + jnp.dot(cond_ref[...], wc_ref[...],
                      preferred_element_type=jnp.float32))

    f = noise.shape[-1]
    # mean_type == 'eps' => target is the noise (same target for both halves);
    # slices at lane 128 are vreg-aligned and free — no concat of the target.
    d_m = pred[:, :f] - noise
    d_t = pred[:, f:] - noise

    # per-step sublane reduction into tiny resident accumulators (no full-size
    # (TN, 2F) f32 RMW, so the store slot stays off the critical path)
    accm_ref[...] += jnp.sum(d_m * d_m, axis=0, keepdims=True)
    acct_ref[...] += jnp.sum(d_t * d_t, axis=0, keepdims=True)

    # reduce to scalars only once, on the last grid step of this core
    @pl.when(s == pl.num_programs(1) - 1)
    def _():
        sse_m_ref[...] = jnp.sum(accm_ref[...]).reshape(1, 1, 1)
        sse_t_ref[...] = jnp.sum(acct_ref[...]).reshape(1, 1, 1)


def _default_num_cores():
    """2 TensorCores per chip on v7x, 1 on v5e/v6e (megacore row split)."""
    try:
        kind = jax.devices()[0].device_kind.lower()
        return 2 if ("v7" in kind or "7x" in kind) else 1
    except Exception:
        return 1


def mdvad_loss(x, noise, t, mot, text, params, betas, *,
               tile_rows=1024, num_cores=None):
    """MDVAD.forward / get_losses:
         loss = mse(mot_model(px, t, mot), noise) + mse(text_model(px, t, text), noise)."""
    B, L, F = x.shape
    N = B * L
    Cm = mot.shape[-1]
    Ct = text.shape[-1]
    C_cond = Cm + Ct

    if num_cores is None:
        num_cores = _default_num_cores()

    # diffusion schedule buffers (same math as the torch __init__)
    betas = betas.astype(jnp.float32)
    alphas_bar = jnp.cumprod(1.0 - betas)
    sqrt_alphas_cumprod = jnp.sqrt(alphas_bar)
    sqrt_one_minus_alphas_cumprod = jnp.sqrt(1.0 - alphas_bar)

    # extract(a, t, x.shape): per-row gather packed into one (N, 2) stream
    c12 = jnp.stack([sqrt_alphas_cumprod[t],
                     sqrt_one_minus_alphas_cumprod[t]], axis=-1).astype(jnp.float32)

    # x only ever feeds the MXU as bf16 -> stream it as bf16 (fewer HBM bytes);
    # noise stays f32 so the loss target keeps reference precision.
    xf = x.reshape(N, F).astype(jnp.bfloat16)
    nf = noise.reshape(N, F).astype(jnp.float32)
    cond = jnp.concatenate([mot.reshape(N, Cm), text.reshape(N, Ct)],
                           axis=-1).astype(jnp.bfloat16)

    # fused surrogate weights (bf16 for the MXU; f32 accumulation in-kernel)
    w_cat = jnp.concatenate([params["w_mot"], params["w_text"]],
                            axis=1).astype(jnp.bfloat16)              # (F, 2F)
    wc_block = jnp.zeros((C_cond, 2 * F), jnp.float32)
    wc_block = wc_block.at[:Cm, :F].set(params["wc_mot"])
    wc_block = wc_block.at[Cm:, F:].set(params["wc_text"])
    wc_block = wc_block.astype(jnp.bfloat16)                          # (Cm+Ct, 2F)

    TN = tile_rows
    C = num_cores
    rows_per_pass = C * TN
    N_pad = ((N + rows_per_pass - 1) // rows_per_pass) * rows_per_pass
    pad = N_pad - N
    if pad:
        # zero rows contribute exactly 0 to the SSE (bias-free surrogate, zero
        # schedule coeffs), so padding does not change the loss; denom uses
        # the true N below.
        xf = jnp.pad(xf, ((0, pad), (0, 0)))
        nf = jnp.pad(nf, ((0, pad), (0, 0)))
        c12 = jnp.pad(c12, ((0, pad), (0, 0)))
        cond = jnp.pad(cond, ((0, pad), (0, 0)))
    S = N_pad // rows_per_pass    # grid steps per core

    row = lambda c, s: (c * S + s, 0)
    full = lambda c, s: (0, 0)
    out_map = lambda c, s: (c, 0, 0)

    sse_m, sse_t = pl.pallas_call(
        _mdvad_loss_kernel,
        out_shape=(jax.ShapeDtypeStruct((C, 1, 1), jnp.float32),
                   jax.ShapeDtypeStruct((C, 1, 1), jnp.float32)),
        grid_spec=pltpu.PrefetchScalarGridSpec(
            num_scalar_prefetch=0,
            grid=(C, S),
            in_specs=[
                pl.BlockSpec((TN, F), row),          # x rows (bf16)
                pl.BlockSpec((TN, F), row),          # noise rows (f32)
                pl.BlockSpec((TN, 2), row),          # packed schedule coeffs
                pl.BlockSpec((TN, C_cond), row),     # [mot | text] cond rows (bf16)
                pl.BlockSpec((F, 2 * F), full),      # [W_mot | W_text]
                pl.BlockSpec((C_cond, 2 * F), full), # blockdiag(Wc_mot, Wc_text)
            ],
            out_specs=(pl.BlockSpec((1, 1, 1), out_map),
                       pl.BlockSpec((1, 1, 1), out_map)),
            scratch_shapes=[pltpu.VMEM((1, F), jnp.float32),
                            pltpu.VMEM((1, F), jnp.float32)],
        ),
        compiler_params=pltpu.CompilerParams(
            dimension_semantics=("parallel", "arbitrary"),
            vmem_limit_bytes=32 * 1024 * 1024),
    )(xf, nf, c12, cond, w_cat, wc_block)

    # F.mse_loss reduction='mean' over all (true) elements for each branch
    denom = jnp.float32(N * F)
    return (jnp.sum(sse_m) + jnp.sum(sse_t)) / denom


def _reference_loss(x, noise, t, mot, text, params, betas):
    """Pure-JAX reference with the same numerics (bf16-streamed x, bf16 matmul
    operands, f32 accumulation) as the kernel."""
    B, L, F = x.shape
    N = B * L
    alphas_bar = jnp.cumprod(1.0 - betas.astype(jnp.float32))
    c1 = jnp.sqrt(alphas_bar)[t][:, None]
    c2 = jnp.sqrt(1.0 - alphas_bar)[t][:, None]
    xf = x.reshape(N, F).astype(jnp.bfloat16).astype(jnp.float32)
    nf = noise.reshape(N, F).astype(jnp.float32)
    px = (c1 * xf + c2 * nf).astype(jnp.bfloat16)
    cm = mot.reshape(N, -1).astype(jnp.bfloat16)
    ct = text.reshape(N, -1).astype(jnp.bfloat16)
    pred_m = (jnp.dot(px, params["w_mot"].astype(jnp.bfloat16),
                      preferred_element_type=jnp.float32)
              + jnp.dot(cm, params["wc_mot"].astype(jnp.bfloat16),
                        preferred_element_type=jnp.float32))
    pred_t = (jnp.dot(px, params["w_text"].astype(jnp.bfloat16),
                      preferred_element_type=jnp.float32)
              + jnp.dot(ct, params["wc_text"].astype(jnp.bfloat16),
                        preferred_element_type=jnp.float32))
    return jnp.mean((pred_m - nf) ** 2) + jnp.mean((pred_t - nf) ** 2)


if __name__ == "__main__":
    key = jax.random.PRNGKey(0)
    # small shapes consistent with forward(x:(B,L,F), mot:(B,L,Cm), text:(B,L,Ct));
    # L=100 deliberately makes N=400 non-divisible by the tile to exercise padding.
    B, L, F = 4, 100, 128
    Cm, Ct = 32, 64
    T = 100

    betas = jnp.linspace(1e-4, 2e-2, T, dtype=jnp.float32)

    ks = jax.random.split(key, 9)
    x = jax.random.normal(ks[0], (B, L, F), jnp.float32)
    mot = jax.random.normal(ks[1], (B, L, Cm), jnp.float32)
    text = jax.random.normal(ks[2], (B, L, Ct), jnp.float32)
    # torch forward draws these internally (randint / randn); here they are
    # deterministic draws passed in explicitly.
    noise = jax.random.normal(ks[3], (B * L, F), jnp.float32)
    t = jax.random.randint(ks[4], (B * L,), 0, T)

    # deterministic surrogate-model parameters
    params = {
        "w_mot":   jax.random.normal(ks[5], (F, F), jnp.float32) / jnp.sqrt(F),
        "wc_mot":  jax.random.normal(ks[6], (Cm, F), jnp.float32) / jnp.sqrt(Cm),
        "w_text":  jax.random.normal(ks[7], (F, F), jnp.float32) / jnp.sqrt(F),
        "wc_text": jax.random.normal(ks[8], (Ct, F), jnp.float32) / jnp.sqrt(Ct),
    }

    # tile_rows=128 / num_cores=1 here so the small test still runs several
    # accumulation steps (S=4); production default is tile_rows=1024 with
    # num_cores auto-detected (2 on v7x, 1 on v5e/v6e).
    loss = mdvad_loss(x, noise, t, mot, text, params, betas,
                      tile_rows=128, num_cores=1)
    loss = jax.block_until_ready(loss)

    ref = jax.block_until_ready(_reference_loss(x, noise, t, mot, text, params, betas))
    np.testing.assert_allclose(np.asarray(loss), np.asarray(ref), rtol=1e-3, atol=1e-3)

    print("KERNEL_OK")
</pallas_src>

<mosaic_0001>
module attributes {stable_mosaic.version = 11 : i64} {
  func.func @_mdvad_loss_kernel(%arg0: i32, %arg1: i32, %arg2: memref<128x128xbf16, #tpu.memory_space<vmem>>, %arg3: memref<128x128xf32, #tpu.memory_space<vmem>>, %arg4: memref<128x2xf32, #tpu.memory_space<vmem>>, %arg5: memref<128x96xbf16, #tpu.memory_space<vmem>>, %arg6: memref<128x256xbf16, #tpu.memory_space<vmem>>, %arg7: memref<96x256xbf16, #tpu.memory_space<vmem>>, %arg8: memref<1x1x1xf32, #tpu.memory_space<vmem>>, %arg9: memref<1x1x1xf32, #tpu.memory_space<vmem>>, %arg10: memref<1x128xf32, #tpu.memory_space<vmem>>, %arg11: memref<1x128xf32, #tpu.memory_space<vmem>>) attributes {dimension_semantics = [#tpu.dimension_semantics<parallel>, #tpu.dimension_semantics<arbitrary>], iteration_bounds = array<i64: 1, 4>, scalar_prefetch = 0 : i64, scratch_operands = 2 : i64, tpu.core_type = #tpu.core_type<tc>, window_params = [{transform_indices = @transform_0, window_bounds = array<i64: 128, 128>}, {transform_indices = @transform_1, window_bounds = array<i64: 128, 128>}, {transform_indices = @transform_2, window_bounds = array<i64: 128, 2>}, {transform_indices = @transform_3, window_bounds = array<i64: 128, 96>}, {pipeline_mode = #tpu.pipeline_mode<synchronous>, transform_indices = @transform_4, window_bounds = array<i64: 128, 256>}, {pipeline_mode = #tpu.pipeline_mode<synchronous>, transform_indices = @transform_5, window_bounds = array<i64: 96, 256>}, {transform_indices = @transform_6, window_bounds = array<i64: 1, 1, 1>}, {transform_indices = @transform_7, window_bounds = array<i64: 1, 1, 1>}]} {
    %c0_i32 = arith.constant 0 : i32
    %0 = arith.cmpi eq, %arg1, %c0_i32 : i32
    %1 = arith.extui %0 : i1 to i32
    %c0_i32_0 = arith.constant 0 : i32
    %2 = arith.cmpi ne, %1, %c0_i32_0 : i32
    scf.if %2 {
      %cst_25 = arith.constant 0.000000e+00 : f32
      %39 = vector.broadcast %cst_25 : f32 to vector<1x128xf32>
      %c0_26 = arith.constant 0 : index
      %c0_27 = arith.constant 0 : index
      %40 = vector.load %arg10[%c0_26, %c0_27] : memref<1x128xf32, #tpu.memory_space<vmem>>, vector<1x128xf32>
      tpu.vector_store %arg10[%c0_26, %c0_27], %39 {strides = array<i32>} : memref<1x128xf32, #tpu.memory_space<vmem>>, vector<1x128xf32>,
      %cst_28 = arith.constant 0.000000e+00 : f32
      %41 = vector.broadcast %cst_28 : f32 to vector<1x128xf32>
      %c0_29 = arith.constant 0 : index
      %c0_30 = arith.constant 0 : index
      %42 = vector.load %arg11[%c0_29, %c0_30] : memref<1x128xf32, #tpu.memory_space<vmem>>, vector<1x128xf32>
      tpu.vector_store %arg11[%c0_29, %c0_30], %41 {strides = array<i32>} : memref<1x128xf32, #tpu.memory_space<vmem>>, vector<1x128xf32>,
    } else {
    }
    %c0 = arith.constant 0 : index
    %c0_1 = arith.constant 0 : index
    %3 = vector.load %arg2[%c0, %c0_1] : memref<128x128xbf16, #tpu.memory_space<vmem>>, vector<128x128xbf16>
    %4 = arith.extf %3 : vector<128x128xbf16> to vector<128x128xf32>
    %c0_2 = arith.constant 0 : index
    %c0_3 = arith.constant 0 : index
    %5 = vector.load %arg3[%c0_2, %c0_3] : memref<128x128xf32, #tpu.memory_space<vmem>>, vector<128x128xf32>
    %c0_4 = arith.constant 0 : index
    %c0_5 = arith.constant 0 : index
    %6 = vector.load %arg4[%c0_4, %c0_5] : memref<128x2xf32, #tpu.memory_space<vmem>>, vector<128x1xf32>
    %c0_6 = arith.constant 0 : index
    %c1 = arith.constant 1 : index
    %7 = vector.load %arg4[%c0_6, %c1] : memref<128x2xf32, #tpu.memory_space<vmem>>, vector<128x1xf32>
    %8 = vector.broadcast %6 : vector<128x1xf32> to vector<128x128xf32>
    %9 = arith.mulf %8, %4 : vector<128x128xf32>
    %10 = vector.broadcast %7 : vector<128x1xf32> to vector<128x128xf32>
    %11 = arith.mulf %10, %5 : vector<128x128xf32>
    %12 = arith.addf %9, %11 : vector<128x128xf32>
    %13 = arith.truncf %12 : vector<128x128xf32> to vector<128x128xbf16>
    %c0_7 = arith.constant 0 : index
    %c0_8 = arith.constant 0 : index
    %14 = vector.load %arg6[%c0_7, %c0_8] : memref<128x256xbf16, #tpu.memory_space<vmem>>, vector<128x256xbf16>
    %cst = arith.constant dense<0.000000e+00> : vector<128x256xf32>
    %15 = tpu.matmul %13, %14, %cst {dimension_numbers = #tpu.dot_dimension_numbers<[1], [0], [0], [1], [0, 0, 1, 1], [], []>} : vector<128x128xbf16>, vector<128x256xbf16>, vector<128x256xf32> -> vector<128x256xf32>
    %c0_9 = arith.constant 0 : index
    %c0_10 = arith.constant 0 : index
    %16 = vector.load %arg5[%c0_9, %c0_10] : memref<128x96xbf16, #tpu.memory_space<vmem>>, vector<128x96xbf16>
    %c0_11 = arith.constant 0 : index
    %c0_12 = arith.constant 0 : index
    %17 = vector.load %arg7[%c0_11, %c0_12] : memref<96x256xbf16, #tpu.memory_space<vmem>>, vector<96x256xbf16>
    %cst_13 = arith.constant dense<0.000000e+00> : vector<128x256xf32>
    %18 = tpu.matmul %16, %17, %cst_13 {dimension_numbers = #tpu.dot_dimension_numbers<[1], [0], [0], [1], [0, 0, 1, 1], [], []>} : vector<128x96xbf16>, vector<96x256xbf16>, vector<128x256xf32> -> vector<128x256xf32>
    %19 = arith.addf %15, %18 : vector<128x256xf32>
    %20 = vector.extract_strided_slice %19 {offsets = [0, 0], sizes = [128, 128], strides = [1, 1]} : vector<128x256xf32> to vector<128x128xf32>
    %21 = arith.subf %20, %5 : vector<128x128xf32>
    %22 = vector.extract_strided_slice %19 {offsets = [0, 128], sizes = [128, 128], strides = [1, 1]} : vector<128x256xf32> to vector<128x128xf32>
    %23 = arith.subf %22, %5 : vector<128x128xf32>
    %c0_14 = arith.constant 0 : index
    %c0_15 = arith.constant 0 : index
    %24 = vector.load %arg10[%c0_14, %c0_15] : memref<1x128xf32, #tpu.memory_space<vmem>>, vector<1x128xf32>
    %25 = arith.mulf %21, %21 : vector<128x128xf32>
    %cst_16 = arith.constant dense<0.000000e+00> : vector<128xf32>
    %26 = vector.multi_reduction <add>, %25, %cst_16 [0] : vector<128x128xf32> to vector<128xf32>
    %27 = vector.shape_cast %26 : vector<128xf32> to vector<1x128xf32>
    %28 = arith.addf %24, %27 : vector<1x128xf32>
    %c0_17 = arith.constant 0 : index
    %c0_18 = arith.constant 0 : index
    %29 = vector.load %arg10[%c0_17, %c0_18] : memref<1x128xf32, #tpu.memory_space<vmem>>, vector<1x128xf32>
    tpu.vector_store %arg10[%c0_17, %c0_18], %28 {strides = array<i32>} : memref<1x128xf32, #tpu.memory_space<vmem>>, vector<1x128xf32>,
    %c0_19 = arith.constant 0 : index
    %c0_20 = arith.constant 0 : index
    %30 = vector.load %arg11[%c0_19, %c0_20] : memref<1x128xf32, #tpu.memory_space<vmem>>, vector<1x128xf32>
    %31 = arith.mulf %23, %23 : vector<128x128xf32>
    %cst_21 = arith.constant dense<0.000000e+00> : vector<128xf32>
    %32 = vector.multi_reduction <add>, %31, %cst_21 [0] : vector<128x128xf32> to vector<128xf32>
    %33 = vector.shape_cast %32 : vector<128xf32> to vector<1x128xf32>
    %34 = arith.addf %30, %33 : vector<1x128xf32>
    %c0_22 = arith.constant 0 : index
    %c0_23 = arith.constant 0 : index
    %35 = vector.load %arg11[%c0_22, %c0_23] : memref<1x128xf32, #tpu.memory_space<vmem>>, vector<1x128xf32>
    tpu.vector_store %arg11[%c0_22, %c0_23], %34 {strides = array<i32>} : memref<1x128xf32, #tpu.memory_space<vmem>>, vector<1x128xf32>,
    %c3_i32 = arith.constant 3 : i32
    %36 = arith.cmpi eq, %arg1, %c3_i32 : i32
    %37 = arith.extui %36 : i1 to i32
    %c0_i32_24 = arith.constant 0 : i32
    %38 = arith.cmpi ne, %37, %c0_i32_24 : i32
    scf.if %38 {
      %c0_25 = arith.constant 0 : index
      %c0_26 = arith.constant 0 : index
      %39 = vector.load %arg10[%c0_25, %c0_26] : memref<1x128xf32, #tpu.memory_space<vmem>>, vector<1x128xf32>
      %40 = vector.shape_cast %39 : vector<1x128xf32> to vector<1x1x128xf32>
      %cst_27 = arith.constant dense<0.000000e+00> : vector<1xf32>
      %41 = vector.multi_reduction <add>, %40, %cst_27 [1, 2] : vector<1x1x128xf32> to vector<1xf32>
      %42 = vector.shape_cast %41 : vector<1xf32> to vector<1x1x1xf32>
      %43 = vector.extract %42[0, 0, 0] : f32 from vector<1x1x1xf32>
      %44 = vector.broadcast %43 : f32 to vector<1x1x1xf32>
      %c0_28 = arith.constant 0 : index
      %c0_29 = arith.constant 0 : index
      %c0_30 = arith.constant 0 : index
      %45 = vector.load %arg8[%c0_28, %c0_29, %c0_30] : memref<1x1x1xf32, #tpu.memory_space<vmem>>, vector<1x1x1xf32>
      tpu.vector_store %arg8[%c0_28, %c0_29, %c0_30], %44 {strides = array<i32>} : memref<1x1x1xf32, #tpu.memory_space<vmem>>, vector<1x1x1xf32>,
      %c0_31 = arith.constant 0 : index
      %c0_32 = arith.constant 0 : index
      %46 = vector.load %arg11[%c0_31, %c0_32] : memref<1x128xf32, #tpu.memory_space<vmem>>, vector<1x128xf32>
      %47 = vector.shape_cast %46 : vector<1x128xf32> to vector<1x1x128xf32>
      %cst_33 = arith.constant dense<0.000000e+00> : vector<1xf32>
      %48 = vector.multi_reduction <add>, %47, %cst_33 [1, 2] : vector<1x1x128xf32> to vector<1xf32>
      %49 = vector.shape_cast %48 : vector<1xf32> to vector<1x1x1xf32>
      %50 = vector.extract %49[0, 0, 0] : f32 from vector<1x1x1xf32>
      %51 = vector.broadcast %50 : f32 to vector<1x1x1xf32>
      %c0_34 = arith.constant 0 : index
      %c0_35 = arith.constant 0 : index
      %c0_36 = arith.constant 0 : index
      %52 = vector.load %arg9[%c0_34, %c0_35, %c0_36] : memref<1x1x1xf32, #tpu.memory_space<vmem>>, vector<1x1x1xf32>
      tpu.vector_store %arg9[%c0_34, %c0_35, %c0_36], %51 {strides = array<i32>} : memref<1x1x1xf32, #tpu.memory_space<vmem>>, vector<1x1x1xf32>,
    } else {
    }
    return
  }
  func.func @transform_0(%arg0: i32, %arg1: i32) -> (i32, i32) {
    %c4_i32 = arith.constant 4 : i32
    %0 = arith.muli %arg0, %c4_i32 : i32
    %1 = arith.addi %0, %arg1 : i32
    %c0_i32 = arith.constant 0 : i32
    %c0_i32_0 = arith.constant 0 : i32
    return %1, %c0_i32 : i32, i32
  }
  func.func @transform_1(%arg0: i32, %arg1: i32) -> (i32, i32) {
    %c4_i32 = arith.constant 4 : i32
    %0 = arith.muli %arg0, %c4_i32 : i32
    %1 = arith.addi %0, %arg1 : i32
    %c0_i32 = arith.constant 0 : i32
    %c0_i32_0 = arith.constant 0 : i32
    return %1, %c0_i32 : i32, i32
  }
  func.func @transform_2(%arg0: i32, %arg1: i32) -> (i32, i32) {
    %c4_i32 = arith.constant 4 : i32
    %0 = arith.muli %arg0, %c4_i32 : i32
    %1 = arith.addi %0, %arg1 : i32
    %c0_i32 = arith.constant 0 : i32
    %c0_i32_0 = arith.constant 0 : i32
    return %1, %c0_i32 : i32, i32
  }
  func.func @transform_3(%arg0: i32, %arg1: i32) -> (i32, i32) {
    %c4_i32 = arith.constant 4 : i32
    %0 = arith.muli %arg0, %c4_i32 : i32
    %1 = arith.addi %0, %arg1 : i32
    %c0_i32 = arith.constant 0 : i32
    %c0_i32_0 = arith.constant 0 : i32
    return %1, %c0_i32 : i32, i32
  }
  func.func @transform_4(%arg0: i32, %arg1: i32) -> (i32, i32) {
    %c0_i32 = arith.constant 0 : i32
    %c0_i32_0 = arith.constant 0 : i32
    %c0_i32_1 = arith.constant 0 : i32
    return %c0_i32, %c0_i32_0 : i32, i32
  }
  func.func @transform_5(%arg0: i32, %arg1: i32) -> (i32, i32) {
    %c0_i32 = arith.constant 0 : i32
    %c0_i32_0 = arith.constant 0 : i32
    %c0_i32_1 = arith.constant 0 : i32
    return %c0_i32, %c0_i32_0 : i32, i32
  }
  func.func @transform_6(%arg0: i32, %arg1: i32) -> (i32, i32, i32) {
    %c0_i32 = arith.constant 0 : i32
    %c0_i32_0 = arith.constant 0 : i32
    %c0_i32_1 = arith.constant 0 : i32
    return %arg0, %c0_i32, %c0_i32_0 : i32, i32, i32
  }
  func.func @transform_7(%arg0: i32, %arg1: i32) -> (i32, i32, i32) {
    %c0_i32 = arith.constant 0 : i32
    %c0_i32_0 = arith.constant 0 : i32
    %c0_i32_1 = arith.constant 0 : i32
    return %arg0, %c0_i32, %c0_i32_0 : i32, i32, i32
  }
}

</mosaic_0001>

<llo_original>
// kernel: tpu_custom_call.1
$region0: #{tpu_custom_call.1}
  #allocation0 [shape = 'u32[]', space=smem, size = 0x4, offset = 0x4, fixed_abs, tag = 'smem constant byte address 0x4 - core index']
  #allocation1 [shape = 'u32[144,128]{1,0:T(1,128)}', space=vmem, size = 0x12000, scoped, tag = 'internal scratch']
  #allocation2 [shape = 'f32[1,128]{1,0:T(1,128)}', space=vmem, size = 0x200, scoped, tag = 'scratch operand']
  #allocation3 [shape = 'f32[1,128]{1,0:T(1,128)}', space=vmem, size = 0x200, scoped, tag = 'scratch operand']
  %s0 = inlined_call_operand.vmem [shape: bf16[512,128], index: 0, kind: input, shape index: {}]
  %s1 = inlined_call_operand.vmem [shape: f32[512,128], index: 1, kind: input, shape index: {}]
  %s2 = inlined_call_operand.vmem [shape: f32[512,2], index: 2, kind: input, shape index: {}]
  %s3 = inlined_call_operand.vmem [shape: bf16[512,96], index: 3, kind: input, shape index: {}]
  %s4 = inlined_call_operand.vmem [shape: bf16[128,256], index: 4, kind: input, shape index: {}]
  %s5 = inlined_call_operand.hbm [shape: bf16[96,256], index: 5, kind: input, shape index: {}]
  %s6 = inlined_call_operand.hbm [shape: f32[1,1,1], index: 6, kind: output, shape index: {0}]
  %s7 = inlined_call_operand.hbm [shape: f32[1,1,1], index: 7, kind: output, shape index: {1}]
  %8 = xla_tuple %s6, %s7
  %s9 = sld [smem:[#allocation0]]
  $region77: #{tpu_custom_call.1} parent=0
    _
  %s11 = ssub.s32 1, %s9
  %s12 = scalar_select 0, %s11, %s9
  $region1: #{tpu_custom_call.1} parent=0
    #allocation4 [shape = 'u8[49152]{0}', space=vmem, size = 0xc000, scoped, tag = 'input window, operand 5, single buffered']
    #allocation5 [shape = 's32[2]{0}', space=sflag, size = 0x8, scoped, tag = 'scoped memory for tpu_custom_call.1']
    #allocation6 [shape = 's32[2]{0}', space=sflag, size = 0x8, scoped, tag = 'scoped memory for tpu_custom_call.1']
    #allocation7 [shape = 'u8[512]{0}', space=vmem, size = 0x400, scoped, tag = 'output window, operand 0, single buffered']
    #allocation8 [shape = 'u8[512]{0}', space=vmem, size = 0x400, scoped, tag = 'output window, operand 1, single buffered']
    #allocation9 [shape = 's32[1]{0}', space=sflag, size = 0x4, scoped, tag = 'scoped memory for tpu_custom_call.1']
    %13 = vsyncpa [#allocation5], 0
    %14 = vsyncpa [#allocation6], 0
    %15 = vsyncpa [#allocation9], 0
    loop: start=0, step=1, limit=6
    $region2: #{tpu_custom_call.1} parent=1 // loop_pre_header
      _
    $region3: #{tpu_custom_call.1} parent=1 // loop_header
      %s17 = sphi 0, %s21
      %p18 = scmp.ge.s32.totalorder %s17, 6
      %s24 = sphi 0, %s36
      %s25 = sphi 0, %s32
      %s26 = sphi 0, %s24
      %s27 = sphi 0, %s25
      %s28 = sphi 0, %s26
      %s29 = sphi 0, %s27
      %s43 = sphi 0, %s45
      %s46 = sphi 0, %s43
      %s47 = sphi 0, %s46
      %s63 = sphi 0, %s47
      %s73 = sphi 0, %s75
      %s76 = sphi 0, %s73
      %s77 = sphi 0, %s76
      %s93 = sphi 0, %s77
      %s103 = sphi 0, %s105
      %s106 = sphi 0, %s103
      %s107 = sphi 0, %s106
      %s123 = sphi 0, %s107
      %s133 = sphi 0, %s135
      %s136 = sphi 0, %s133
      %s137 = sphi 0, %s136
      %s153 = sphi 0, %s137
      %s157 = sphi 0, %s157
      %s159 = sphi 0, %s157
      %s160 = sphi 0, %s159
      %s174 = sphi 0, %s160
      %s178 = sphi 0, %s178
      %s180 = sphi 0, %s178
      %s181 = sphi 0, %s180
      %s195 = sphi 0, %s181
      %s201 = sphi 0, %s203
      %s204 = sphi 0, %s201
      %s205 = sphi 0, %s204
      %s221 = sphi 0, %s205
      %s227 = sphi 0, %s229
      %s230 = sphi 0, %s227
      %s231 = sphi 0, %s230
      %s247 = sphi 0, %s231
    $region4: #{tpu_custom_call.1} parent=1 // loop_header_branch
      %20 = sbr.rel (%p18) target = $region8
    $region5: #{tpu_custom_call.1} parent=1 // loop_body
      %s22 = ssub.s32 %s17, 1
      %s23 = ssub.s32 %s17, 2
      %s30 = sadd.s32 1, %s25
      %p31 = scmp.ge.s32.totalorder %s30, 4
      %s32 = scalar_select %p31, 0, %s30
      %s33 = sadd.s32 1, %s24
      %s34 = scalar_select %p31, %s33, %s24
      %p35 = scmp.ge.s32.totalorder %s34, 1
      %s36 = scalar_select %p35, 0, %s34
      %s37 = smul.u32 %s24, 4
      %s38 = sadd.s32 %s37, %s25
      %s39 = smul.u32 %s36, 4
      %s40 = sadd.s32 %s39, %s32
      %s41 = ssub.s32 %s38, %s40
      %p42 = scmp.eq.s32.totalorder %s41, 0
      %s44 = sadd.s32 %s43, 1
      %s45 = scalar_select %p42, %s43, %s44
      %p48 = pneg %p42
      %p49 = scmp.eq.s32.totalorder %s17, 3
      %p50 = por %p48, %p49
      %p51 = scmp.ne.s32.totalorder %s43, %s46
      %p52 = scmp.eq.s32.totalorder %s17, 0
      %p53 = por %p51, %p52
      %p54 = scmp.ne.s32.totalorder %s43, %s46
      %p55 = scmp.eq.s32.totalorder %s22, 3
      %p56 = por %p54, %p55
      %p57 = scmp.ne.s32.totalorder %s46, %s47
      %p58 = scmp.eq.s32.totalorder %s22, 0
      %p59 = por %p57, %p58
      %p60 = scmp.ne.s32.totalorder %s46, %s47
      %p61 = scmp.eq.s32.totalorder %s23, 3
      %p62 = por %p60, %p61
      %p64 = scmp.ne.s32.totalorder %s47, %s63
      %p65 = scmp.eq.s32.totalorder %s23, 0
      %p66 = por %p64, %p65
      %s67 = smul.u32 %s24, 4
      %s68 = sadd.s32 %s67, %s25
      %s69 = smul.u32 %s36, 4
      %s70 = sadd.s32 %s69, %s32
      %s71 = ssub.s32 %s68, %s70
      %p72 = scmp.eq.s32.totalorder %s71, 0
      %s74 = sadd.s32 %s73, 1
      %s75 = scalar_select %p72, %s73, %s74
      %p78 = pneg %p72
      %p79 = scmp.eq.s32.totalorder %s17, 3
      %p80 = por %p78, %p79
      %p81 = scmp.ne.s32.totalorder %s73, %s76
      %p82 = scmp.eq.s32.totalorder %s17, 0
      %p83 = por %p81, %p82
      %p84 = scmp.ne.s32.totalorder %s73, %s76
      %p85 = scmp.eq.s32.totalorder %s22, 3
      %p86 = por %p84, %p85
      %p87 = scmp.ne.s32.totalorder %s76, %s77
      %p88 = scmp.eq.s32.totalorder %s22, 0
      %p89 = por %p87, %p88
      %p90 = scmp.ne.s32.totalorder %s76, %s77
      %p91 = scmp.eq.s32.totalorder %s23, 3
      %p92 = por %p90, %p91
      %p94 = scmp.ne.s32.totalorder %s77, %s93
      %p95 = scmp.eq.s32.totalorder %s23, 0
      %p96 = por %p94, %p95
      %s97 = smul.u32 %s24, 4
      %s98 = sadd.s32 %s97, %s25
      %s99 = smul.u32 %s36, 4
      %s100 = sadd.s32 %s99, %s32
      %s101 = ssub.s32 %s98, %s100
      %p102 = scmp.eq.s32.totalorder %s101, 0
      %s104 = sadd.s32 %s103, 1
      %s105 = scalar_select %p102, %s103, %s104
      %p108 = pneg %p102
      %p109 = scmp.eq.s32.totalorder %s17, 3
      %p110 = por %p108, %p109
      %p111 = scmp.ne.s32.totalorder %s103, %s106
      %p112 = scmp.eq.s32.totalorder %s17, 0
      %p113 = por %p111, %p112
      %p114 = scmp.ne.s32.totalorder %s103, %s106
      %p115 = scmp.eq.s32.totalorder %s22, 3
      %p116 = por %p114, %p115
      %p117 = scmp.ne.s32.totalorder %s106, %s107
      %p118 = scmp.eq.s32.totalorder %s22, 0
      %p119 = por %p117, %p118
      %p120 = scmp.ne.s32.totalorder %s106, %s107
      %p121 = scmp.eq.s32.totalorder %s23, 3
      %p122 = por %p120, %p121
      %p124 = scmp.ne.s32.totalorder %s107, %s123
      %p125 = scmp.eq.s32.totalorder %s23, 0
      %p126 = por %p124, %p125
      %s127 = smul.u32 %s24, 4
      %s128 = sadd.s32 %s127, %s25
      %s129 = smul.u32 %s36, 4
      %s130 = sadd.s32 %s129, %s32
      %s131 = ssub.s32 %s128, %s130
      %p132 = scmp.eq.s32.totalorder %s131, 0
      %s134 = sadd.s32 %s133, 1
      %s135 = scalar_select %p132, %s133, %s134
      %p138 = pneg %p132
      %p139 = scmp.eq.s32.totalorder %s17, 3
      %p140 = por %p138, %p139
      %p141 = scmp.ne.s32.totalorder %s133, %s136
      %p142 = scmp.eq.s32.totalorder %s17, 0
      %p143 = por %p141, %p142
      %p144 = scmp.ne.s32.totalorder %s133, %s136
      %p145 = scmp.eq.s32.totalorder %s22, 3
      %p146 = por %p144, %p145
      %p147 = scmp.ne.s32.totalorder %s136, %s137
      %p148 = scmp.eq.s32.totalorder %s22, 0
      %p149 = por %p147, %p148
      %p150 = scmp.ne.s32.totalorder %s136, %s137
      %p151 = scmp.eq.s32.totalorder %s23, 3
      %p152 = por %p150, %p151
      %p154 = scmp.ne.s32.totalorder %s137, %s153
      %p155 = scmp.eq.s32.totalorder %s23, 0
      %p156 = por %p154, %p155
      %s158 = sadd.s32 %s157, 1
      %p161 = scmp.eq.s32.totalorder %s17, 3
      %p162 = scmp.ne.s32.totalorder %s157, %s159
      %p163 = scmp.eq.s32.totalorder %s17, 0
      %p164 = por %p162, %p163
      %p165 = scmp.ne.s32.totalorder %s157, %s159
      %p166 = scmp.eq.s32.totalorder %s22, 3
      %p167 = por %p165, %p166
      %p168 = scmp.ne.s32.totalorder %s159, %s160
      %p169 = scmp.eq.s32.totalorder %s22, 0
      %p170 = por %p168, %p169
      %p171 = scmp.ne.s32.totalorder %s159, %s160
      %p172 = scmp.eq.s32.totalorder %s23, 3
      %p173 = por %p171, %p172
      %p175 = scmp.ne.s32.totalorder %s160, %s174
      %p176 = scmp.eq.s32.totalorder %s23, 0
      %p177 = por %p175, %p176
      %s179 = sadd.s32 %s178, 1
      %p182 = scmp.eq.s32.totalorder %s17, 3
      %p183 = scmp.ne.s32.totalorder %s178, %s180
      %p184 = scmp.eq.s32.totalorder %s17, 0
      %p185 = por %p183, %p184
      %p186 = scmp.ne.s32.totalorder %s178, %s180
      %p187 = scmp.eq.s32.totalorder %s22, 3
      %p188 = por %p186, %p187
      %p189 = scmp.ne.s32.totalorder %s180, %s181
      %p190 = scmp.eq.s32.totalorder %s22, 0
      %p191 = por %p189, %p190
      %p192 = scmp.ne.s32.totalorder %s180, %s181
      %p193 = scmp.eq.s32.totalorder %s23, 3
      %p194 = por %p192, %p193
      %p196 = scmp.ne.s32.totalorder %s181, %s195
      %p197 = scmp.eq.s32.totalorder %s23, 0
      %p198 = por %p196, %p197
      %s199 = ssub.s32 %s24, %s36
      %p200 = scmp.eq.s32.totalorder %s199, 0
      %s202 = sadd.s32 %s201, 1
      %s203 = scalar_select %p200, %s201, %s202
      %p206 = pneg %p200
      %p207 = scmp.eq.s32.totalorder %s17, 3
      %p208 = por %p206, %p207
      %p209 = scmp.ne.s32.totalorder %s201, %s204
      %p210 = scmp.eq.s32.totalorder %s17, 0
      %p211 = por %p209, %p210
      %p212 = scmp.ne.s32.totalorder %s201, %s204
      %p213 = scmp.eq.s32.totalorder %s22, 3
      %p214 = por %p212, %p213
      %p215 = scmp.ne.s32.totalorder %s204, %s205
      %p216 = scmp.eq.s32.totalorder %s22, 0
      %p217 = por %p215, %p216
      %p218 = scmp.ne.s32.totalorder %s204, %s205
      %p219 = scmp.eq.s32.totalorder %s23, 3
      %p220 = por %p218, %p219
      %p222 = scmp.ne.s32.totalorder %s205, %s221
      %p223 = scmp.eq.s32.totalorder %s23, 0
      %p224 = por %p222, %p223
      %s225 = ssub.s32 %s24, %s36
      %p226 = scmp.eq.s32.totalorder %s225, 0
      %s228 = sadd.s32 %s227, 1
      %s229 = scalar_select %p226, %s227, %s228
      %p232 = pneg %p226
      %p233 = scmp.eq.s32.totalorder %s17, 3
      %p234 = por %p232, %p233
      %p235 = scmp.ne.s32.totalorder %s227, %s230
      %p236 = scmp.eq.s32.totalorder %s17, 0
      %p237 = por %p235, %p236
      %p238 = scmp.ne.s32.totalorder %s227, %s230
      %p239 = scmp.eq.s32.totalorder %s22, 3
      %p240 = por %p238, %p239
      %p241 = scmp.ne.s32.totalorder %s230, %s231
      %p242 = scmp.eq.s32.totalorder %s22, 0
      %p243 = por %p241, %p242
      %p244 = scmp.ne.s32.totalorder %s230, %s231
      %p245 = scmp.eq.s32.totalorder %s23, 3
      %p246 = por %p244, %p245
      %p248 = scmp.ne.s32.totalorder %s231, %s247
      %p249 = scmp.eq.s32.totalorder %s23, 0
      %p250 = por %p248, %p249
      %p251 = scmp.le.s32.totalorder 1, %s17
      %p252 = scmp.lt.s32.totalorder %s17, 5
      %p253 = pnand %p251, %p252
      %p254 = pneg %p253
      // Predicated region
      $region9: #{tpu_custom_call.1} parent=5 // pred_check
        _
      $region10: #{tpu_custom_call.1} parent=5 // pred_check_branch
        %256 = sbr.rel (%p253) target = $region12
      $region11: #{tpu_custom_call.1} parent=5 // pred_region
        %s257 = ssub.s32 %s17, 1
        // Predicated region
        $region13: #{tpu_custom_call.1} parent=11 // pred_check
          %p258 = pneg %p170
        $region14: #{tpu_custom_call.1} parent=11 // pred_check_branch
          %260 = sbr.rel (%p258) target = $region16
        $region15: #{tpu_custom_call.1} parent=11 // pred_region
          _
        $region16: #{tpu_custom_call.1} parent=11 // pred_fallthru
          _
        // Predicated region
        $region17: #{tpu_custom_call.1} parent=11 // pred_check
          %p261 = pneg %p191
        $region18: #{tpu_custom_call.1} parent=11 // pred_check_branch
          %263 = sbr.rel (%p261) target = $region20
        $region19: #{tpu_custom_call.1} parent=11 // pred_region
          %s265 = ssub.s32 1536, 1536
          %266 = vsyncadd [#allocation5], %s265
          %s267 = sshll.u32 [#allocation4], 4
          %s268 = int_to_ptr.vmem [resolvable:$true] %s267
          %273 = dma.hbm_to_vmem [thread:$0]  %s5, 1536, %s268, [#allocation5], 128, 128, 8
        $region20: #{tpu_custom_call.1} parent=11 // pred_fallthru
          _
      $region12: #{tpu_custom_call.1} parent=5 // pred_fallthru
        _
      %p274 = scmp.lt.s32.totalorder %s17, 4
      // Predicated region
      $region21: #{tpu_custom_call.1} parent=5 // pred_check
        %p275 = pneg %p274
      $region22: #{tpu_custom_call.1} parent=5 // pred_check_branch
        %277 = sbr.rel (%p275) target = $region24
      $region23: #{tpu_custom_call.1} parent=5 // pred_region
        // Predicated region
        $region25: #{tpu_custom_call.1} parent=23 // pred_check
          %p278 = pneg %p53
        $region26: #{tpu_custom_call.1} parent=23 // pred_check_branch
          %280 = sbr.rel (%p278) target = $region28
        $region27: #{tpu_custom_call.1} parent=23 // pred_region
          %s281 = smul.u32 %s24, 4
          %s282 = sadd.s32 %s281, %s25
          %s283 = smul.u32 16, %s282
          %p284 = scmp.lt.s32.totalorder %s283, 63
          %s285 = scalar_select %p284, %s283, 63
          %s286 = smul.addr %s285, 4
          %s287 = scalar_lea.vmem %s0, %s286
          %s288 = smul.u32 %s24, 4
          %s289 = sadd.s32 %s288, %s25
          %s290 = smul.u32 16, %s289
        $region28: #{tpu_custom_call.1} parent=23 // pred_fallthru
          _
        // Predicated region
        $region29: #{tpu_custom_call.1} parent=23 // pred_check
          %p291 = pneg %p83
        $region30: #{tpu_custom_call.1} parent=23 // pred_check_branch
          %293 = sbr.rel (%p291) target = $region32
        $region31: #{tpu_custom_call.1} parent=23 // pred_region
          %s294 = smul.u32 %s24, 4
          %s295 = sadd.s32 %s294, %s25
          %s296 = smul.u32 16, %s295
          %p297 = scmp.lt.s32.totalorder %s296, 63
          %s298 = scalar_select %p297, %s296, 63
          %s299 = smul.addr %s298, 8
          %s300 = scalar_lea.vmem %s1, %s299
          %s301 = smul.u32 %s24, 4
          %s302 = sadd.s32 %s301, %s25
          %s303 = smul.u32 16, %s302
        $region32: #{tpu_custom_call.1} parent=23 // pred_fallthru
          _
        // Predicated region
        $region33: #{tpu_custom_call.1} parent=23 // pred_check
          %p304 = pneg %p113
        $region34: #{tpu_custom_call.1} parent=23 // pred_check_branch
          %306 = sbr.rel (%p304) target = $region36
        $region35: #{tpu_custom_call.1} parent=23 // pred_region
          %s307 = smul.u32 %s24, 4
          %s308 = sadd.s32 %s307, %s25
          %s309 = smul.u32 16, %s308
          %p310 = scmp.lt.s32.totalorder %s309, 63
          %s311 = scalar_select %p310, %s309, 63
          %s312 = smul.addr %s311, 8
          %s313 = scalar_lea.vmem %s2, %s312
          %s314 = smul.u32 %s24, 4
          %s315 = sadd.s32 %s314, %s25
          %s316 = smul.u32 16, %s315
        $region36: #{tpu_custom_call.1} parent=23 // pred_fallthru
          _
        // Predicated region
        $region37: #{tpu_custom_call.1} parent=23 // pred_check
          %p317 = pneg %p143
        $region38: #{tpu_custom_call.1} parent=23 // pred_check_branch
          %319 = sbr.rel (%p317) target = $region40
        $region39: #{tpu_custom_call.1} parent=23 // pred_region
          %s320 = smul.u32 %s24, 4
          %s321 = sadd.s32 %s320, %s25
          %s322 = smul.u32 16, %s321
          %p323 = scmp.lt.s32.totalorder %s322, 63
          %s324 = scalar_select %p323, %s322, 63
          %s325 = smul.addr %s324, 4
          %s326 = scalar_lea.vmem %s3, %s325
          %s327 = smul.u32 %s24, 4
          %s328 = sadd.s32 %s327, %s25
          %s329 = smul.u32 16, %s328
        $region40: #{tpu_custom_call.1} parent=23 // pred_fallthru
          _
      $region24: #{tpu_custom_call.1} parent=5 // pred_fallthru
        _
      %p330 = scmp.le.s32.totalorder 1, %s17
      %p331 = scmp.lt.s32.totalorder %s17, 5
      %p332 = pnand %p330, %p331
      %p333 = pneg %p332
      // Predicated region
      $region41: #{tpu_custom_call.1} parent=5 // pred_check
        _
      $region42: #{tpu_custom_call.1} parent=5 // pred_check_branch
        %335 = sbr.rel (%p332) target = $region44
      $region43: #{tpu_custom_call.1} parent=5 // pred_region
        %s336 = ssub.s32 %s17, 1
        // Predicated region
        $region45: #{tpu_custom_call.1} parent=43 // pred_check
          %p337 = pneg %p191
        $region46: #{tpu_custom_call.1} parent=43 // pred_check_branch
          %339 = sbr.rel (%p337) target = $region48
        $region47: #{tpu_custom_call.1} parent=43 // pred_region
          %340 = dma.done [#allocation5], 1536
        $region48: #{tpu_custom_call.1} parent=43 // pred_fallthru
          _
        %s341 = smul.u32 %s26, 4
        %s342 = sadd.s32 %s341, %s27
        %s343 = smul.u32 16, %s342
        %p344 = scmp.lt.s32.totalorder %s343, 63
        %s345 = scalar_select %p344, %s343, 63
        %s346 = smul.addr %s345, 4
        %s347 = scalar_lea.vmem %s0, %s346
        %p348 = pneg %p59
        %p349 = pneg %p56
        %s350 = smul.u32 %s26, 4
        %s351 = sadd.s32 %s350, %s27
        %s352 = smul.u32 16, %s351
        %p353 = scmp.lt.s32.totalorder %s352, 63
        %s354 = scalar_select %p353, %s352, 63
        %s355 = smul.addr %s354, 8
        %s356 = scalar_lea.vmem %s1, %s355
        %p357 = pneg %p89
        %p358 = pneg %p86
        %s359 = smul.u32 %s26, 4
        %s360 = sadd.s32 %s359, %s27
        %s361 = smul.u32 16, %s360
        %p362 = scmp.lt.s32.totalorder %s361, 63
        %s363 = scalar_select %p362, %s361, 63
        %s364 = smul.addr %s363, 8
        %s365 = scalar_lea.vmem %s2, %s364
        %p366 = pneg %p119
        %p367 = pneg %p116
        %s368 = smul.u32 %s26, 4
        %s369 = sadd.s32 %s368, %s27
        %s370 = smul.u32 16, %s369
        %p371 = scmp.lt.s32.totalorder %s370, 63
        %s372 = scalar_select %p371, %s370, 63
        %s373 = smul.addr %s372, 4
        %s374 = scalar_lea.vmem %s3, %s373
        %p375 = pneg %p149
        %p376 = pneg %p146
        %p377 = pneg %p170
        %p378 = pneg %p167
        %p379 = pneg %p191
        %p380 = pneg %p188
        %p381 = pneg %p217
        %p382 = pneg %p214
        %p383 = pneg %p243
        %p384 = pneg %p240
        %s385 = smul.u32 %s26, 4
        %s386 = sadd.s32 %s385, %s27
        %s387 = smul.u32 16, %s386
        %p388 = scmp.lt.s32.totalorder %s387, 63
        %s389 = scalar_select %p388, %s387, 63
        %s390 = smul.addr %s389, 4
        %s391 = scalar_lea.vmem %s0, %s390
        %s392 = smul.u32 %s26, 4
        %s393 = sadd.s32 %s392, %s27
        %s394 = smul.u32 16, %s393
        %s395 = smul.u32 %s26, 4
        %s396 = sadd.s32 %s395, %s27
        %s397 = smul.u32 16, %s396
        %p398 = scmp.lt.s32.totalorder %s397, 63
        %s399 = scalar_select %p398, %s397, 63
        %s400 = smul.addr %s399, 8
        %s401 = scalar_lea.vmem %s1, %s400
        %s402 = smul.u32 %s26, 4
        %s403 = sadd.s32 %s402, %s27
        %s404 = smul.u32 16, %s403
        %s405 = smul.u32 %s26, 4
        %s406 = sadd.s32 %s405, %s27
        %s407 = smul.u32 16, %s406
        %p408 = scmp.lt.s32.totalorder %s407, 63
        %s409 = scalar_select %p408, %s407, 63
        %s410 = smul.addr %s409, 8
        %s411 = scalar_lea.vmem %s2, %s410
        %s412 = smul.u32 %s26, 4
        %s413 = sadd.s32 %s412, %s27
        %s414 = smul.u32 16, %s413
        %s415 = smul.u32 %s26, 4
        %s416 = sadd.s32 %s415, %s27
        %s417 = smul.u32 16, %s416
        %p418 = scmp.lt.s32.totalorder %s417, 63
        %s419 = scalar_select %p418, %s417, 63
        %s420 = smul.addr %s419, 4
        %s421 = scalar_lea.vmem %s3, %s420
        %s422 = smul.u32 %s26, 4
        %s423 = sadd.s32 %s422, %s27
        %s424 = smul.u32 16, %s423
        %p426 = scmp.eq.s32.totalorder %s27, 0
        // Predicated region
        $region49: #{tpu_custom_call.1} parent=43 // pred_check
          %p427 = pneg %p426
        $region50: #{tpu_custom_call.1} parent=43 // pred_check_branch
          %429 = sbr.rel (%p427) target = $region52
        $region51: #{tpu_custom_call.1} parent=43 // pred_region
          %430 = vst [vmem:[#allocation2] sm:$0x1] 0.0
          %431 = vst [vmem:[#allocation3] sm:$0x1] 0.0
        $region52: #{tpu_custom_call.1} parent=43 // pred_fallthru
          _
        %v432 = vld [vmem:[%s391] sm:$0xf]
        %v433 = vld [vmem:[%s391 + $0x4] sm:$0xf]
        %v434 = vld [vmem:[%s391 + $0x8] sm:$0xf]
        %v435 = vld [vmem:[%s391 + $0xc] sm:$0xf]
        %v436 = vld [vmem:[%s391 + $0x10] sm:$0xf]
        %v437 = vld [vmem:[%s391 + $0x14] sm:$0xf]
        %v438 = vld [vmem:[%s391 + $0x18] sm:$0xf]
        %v439 = vld [vmem:[%s391 + $0x1c] sm:$0xf]
        %v440 = vld [vmem:[%s391 + $0x20] sm:$0xf]
        %v441 = vld [vmem:[%s391 + $0x24] sm:$0xf]
        %v442 = vld [vmem:[%s391 + $0x28] sm:$0xf]
        %v443 = vld [vmem:[%s391 + $0x2c] sm:$0xf]
        %v444 = vld [vmem:[%s391 + $0x30] sm:$0xf]
        %v445 = vld [vmem:[%s391 + $0x34] sm:$0xf]
        %v446 = vld [vmem:[%s391 + $0x38] sm:$0xf]
        %v447 = vld [vmem:[%s391 + $0x3c] sm:$0xf]
        %v448 = vunpack.c.l.bf16 %v432
        %v449 = vunpack.c.l.bf16 %v433
        %v450 = vunpack.c.l.bf16 %v434
        %v451 = vunpack.c.l.bf16 %v435
        %v452 = vunpack.c.l.bf16 %v436
        %v453 = vunpack.c.l.bf16 %v437
        %v454 = vunpack.c.l.bf16 %v438
        %v455 = vunpack.c.l.bf16 %v439
        %v456 = vunpack.c.l.bf16 %v440
        %v457 = vunpack.c.l.bf16 %v441
        %v458 = vunpack.c.l.bf16 %v442
        %v459 = vunpack.c.l.bf16 %v443
        %v460 = vunpack.c.l.bf16 %v444
        %v461 = vunpack.c.l.bf16 %v445
        %v462 = vunpack.c.l.bf16 %v446
        %v463 = vunpack.c.l.bf16 %v447
        %v464 = vld [vmem:[%s401] sm:$0xff]
        %v465 = vld [vmem:[%s401 + $0x8] sm:$0xff]
        %v466 = vld [vmem:[%s401 + $0x10] sm:$0xff]
        %v467 = vld [vmem:[%s401 + $0x18] sm:$0xff]
        %v468 = vld [vmem:[%s401 + $0x20] sm:$0xff]
        %v469 = vld [vmem:[%s401 + $0x28] sm:$0xff]
        %v470 = vld [vmem:[%s401 + $0x30] sm:$0xff]
        %v471 = vld [vmem:[%s401 + $0x38] sm:$0xff]
        %v472 = vld [vmem:[%s401 + $0x40] sm:$0xff]
        %v473 = vld [vmem:[%s401 + $0x48] sm:$0xff]
        %v474 = vld [vmem:[%s401 + $0x50] sm:$0xff]
        %v475 = vld [vmem:[%s401 + $0x58] sm:$0xff]
        %v476 = vld [vmem:[%s401 + $0x60] sm:$0xff]
        %v477 = vld [vmem:[%s401 + $0x68] sm:$0xff]
        %v478 = vld [vmem:[%s401 + $0x70] sm:$0xff]
        %v479 = vld [vmem:[%s401 + $0x78] sm:$0xff]
        %v480 = vld [vmem:[%s411] sm:$0xff]
        %v481 = vld [vmem:[%s411 + $0x8] sm:$0xff]
        %v482 = vld [vmem:[%s411 + $0x10] sm:$0xff]
        %v483 = vld [vmem:[%s411 + $0x18] sm:$0xff]
        %v484 = vld [vmem:[%s411 + $0x20] sm:$0xff]
        %v485 = vld [vmem:[%s411 + $0x28] sm:$0xff]
        %v486 = vld [vmem:[%s411 + $0x30] sm:$0xff]
        %v487 = vld [vmem:[%s411 + $0x38] sm:$0xff]
        %v488 = vld [vmem:[%s411 + $0x40] sm:$0xff]
        %v489 = vld [vmem:[%s411 + $0x48] sm:$0xff]
        %v490 = vld [vmem:[%s411 + $0x50] sm:$0xff]
        %v491 = vld [vmem:[%s411 + $0x58] sm:$0xff]
        %v492 = vld [vmem:[%s411 + $0x60] sm:$0xff]
        %v493 = vld [vmem:[%s411 + $0x68] sm:$0xff]
        %v494 = vld [vmem:[%s411 + $0x70] sm:$0xff]
        %v495 = vld [vmem:[%s411 + $0x78] sm:$0xff]
        %497 = vset.pattern.permute.xlu0 0
        %498 = vperm.xlu0 %497, %v480
        %v499 = vpop.permute.xlu0 %498
        %502 = vset.pattern.permute.xlu0 0
        %503 = vperm.xlu0 %502, %v481
        %v504 = vpop.permute.xlu0 %503
        %507 = vset.pattern.permute.xlu0 0
        %508 = vperm.xlu0 %507, %v482
        %v509 = vpop.permute.xlu0 %508
        %512 = vset.pattern.permute.xlu0 0
        %513 = vperm.xlu0 %512, %v483
        %v514 = vpop.permute.xlu0 %513
        %517 = vset.pattern.permute.xlu0 0
        %518 = vperm.xlu0 %517, %v484
        %v519 = vpop.permute.xlu0 %518
        %522 = vset.pattern.permute.xlu0 0
        %523 = vperm.xlu0 %522, %v485
        %v524 = vpop.permute.xlu0 %523
        %527 = vset.pattern.permute.xlu0 0
        %528 = vperm.xlu0 %527, %v486
        %v529 = vpop.permute.xlu0 %528
        %532 = vset.pattern.permute.xlu0 0
        %533 = vperm.xlu0 %532, %v487
        %v534 = vpop.permute.xlu0 %533
        %537 = vset.pattern.permute.xlu0 0
        %538 = vperm.xlu0 %537, %v488
        %v539 = vpop.permute.xlu0 %538
        %542 = vset.pattern.permute.xlu0 0
        %543 = vperm.xlu0 %542, %v489
        %v544 = vpop.permute.xlu0 %543
        %547 = vset.pattern.permute.xlu0 0
        %548 = vperm.xlu0 %547, %v490
        %v549 = vpop.permute.xlu0 %548
        %552 = vset.pattern.permute.xlu0 0
        %553 = vperm.xlu0 %552, %v491
        %v554 = vpop.permute.xlu0 %553
        %557 = vset.pattern.permute.xlu0 0
        %558 = vperm.xlu0 %557, %v492
        %v559 = vpop.permute.xlu0 %558
        %562 = vset.pattern.permute.xlu0 0
        %563 = vperm.xlu0 %562, %v493
        %v564 = vpop.permute.xlu0 %563
        %567 = vset.pattern.permute.xlu0 0
        %568 = vperm.xlu0 %567, %v494
        %v569 = vpop.permute.xlu0 %568
        %572 = vset.pattern.permute.xlu0 0
        %573 = vperm.xlu0 %572, %v495
        %v574 = vpop.permute.xlu0 %573
        %v576 = vmul.f32 %v499, %v448
        %v577 = vmul.f32 %v504, %v449
        %v578 = vmul.f32 %v509, %v450
        %v579 = vmul.f32 %v514, %v451
        %v580 = vmul.f32 %v519, %v452
        %v581 = vmul.f32 %v524, %v453
        %v582 = vmul.f32 %v529, %v454
        %v583 = vmul.f32 %v534, %v455
        %v584 = vmul.f32 %v539, %v456
        %v585 = vmul.f32 %v544, %v457
        %v586 = vmul.f32 %v549, %v458
        %v587 = vmul.f32 %v554, %v459
        %v588 = vmul.f32 %v559, %v460
        %v589 = vmul.f32 %v564, %v461
        %v590 = vmul.f32 %v569, %v462
        %v591 = vmul.f32 %v574, %v463
        %592 = vset.pattern.permute.xlu0 1
        %593 = vperm.xlu0 %592, %v480
        %v594 = vpop.permute.xlu0 %593
        %596 = vset.pattern.permute.xlu0 1
        %597 = vperm.xlu0 %596, %v481
        %v598 = vpop.permute.xlu0 %597
        %600 = vset.pattern.permute.xlu0 1
        %601 = vperm.xlu0 %600, %v482
        %v602 = vpop.permute.xlu0 %601
        %604 = vset.pattern.permute.xlu0 1
        %605 = vperm.xlu0 %604, %v483
        %v606 = vpop.permute.xlu0 %605
        %608 = vset.pattern.permute.xlu0 1
        %609 = vperm.xlu0 %608, %v484
        %v610 = vpop.permute.xlu0 %609
        %612 = vset.pattern.permute.xlu0 1
        %613 = vperm.xlu0 %612, %v485
        %v614 = vpop.permute.xlu0 %613
        %616 = vset.pattern.permute.xlu0 1
        %617 = vperm.xlu0 %616, %v486
        %v618 = vpop.permute.xlu0 %617
        %620 = vset.pattern.permute.xlu0 1
        %621 = vperm.xlu0 %620, %v487
        %v622 = vpop.permute.xlu0 %621
        %624 = vset.pattern.permute.xlu0 1
        %625 = vperm.xlu0 %624, %v488
        %v626 = vpop.permute.xlu0 %625
        %628 = vset.pattern.permute.xlu0 1
        %629 = vperm.xlu0 %628, %v489
        %v630 = vpop.permute.xlu0 %629
        %632 = vset.pattern.permute.xlu0 1
        %633 = vperm.xlu0 %632, %v490
        %v634 = vpop.permute.xlu0 %633
        %636 = vset.pattern.permute.xlu0 1
        %637 = vperm.xlu0 %636, %v491
        %v638 = vpop.permute.xlu0 %637
        %640 = vset.pattern.permute.xlu0 1
        %641 = vperm.xlu0 %640, %v492
        %v642 = vpop.permute.xlu0 %641
        %644 = vset.pattern.permute.xlu0 1
        %645 = vperm.xlu0 %644, %v493
        %v646 = vpop.permute.xlu0 %645
        %648 = vset.pattern.permute.xlu0 1
        %649 = vperm.xlu0 %648, %v494
        %v650 = vpop.permute.xlu0 %649
        %652 = vset.pattern.permute.xlu0 1
        %653 = vperm.xlu0 %652, %v495
        %v654 = vpop.permute.xlu0 %653
        %v656 = vmul.f32 %v594, %v464
        %v657 = vmul.f32 %v598, %v465
        %v658 = vmul.f32 %v602, %v466
        %v659 = vmul.f32 %v606, %v467
        %v660 = vmul.f32 %v610, %v468
        %v661 = vmul.f32 %v614, %v469
        %v662 = vmul.f32 %v618, %v470
        %v663 = vmul.f32 %v622, %v471
        %v664 = vmul.f32 %v626, %v472
        %v665 = vmul.f32 %v630, %v473
        %v666 = vmul.f32 %v634, %v474
        %v667 = vmul.f32 %v638, %v475
        %v668 = vmul.f32 %v642, %v476
        %v669 = vmul.f32 %v646, %v477
        %v670 = vmul.f32 %v650, %v478
        %v671 = vmul.f32 %v654, %v479
        %v672 = vadd.f32 %v576, %v656
        %v673 = vadd.f32 %v577, %v657
        %v674 = vadd.f32 %v578, %v658
        %v675 = vadd.f32 %v579, %v659
        %v676 = vadd.f32 %v580, %v660
        %v677 = vadd.f32 %v581, %v661
        %v678 = vadd.f32 %v582, %v662
        %v679 = vadd.f32 %v583, %v663
        %v680 = vadd.f32 %v584, %v664
        %v681 = vadd.f32 %v585, %v665
        %v682 = vadd.f32 %v586, %v666
        %v683 = vadd.f32 %v587, %v667
        %v684 = vadd.f32 %v588, %v668
        %v685 = vadd.f32 %v589, %v669
        %v686 = vadd.f32 %v590, %v670
        %v687 = vadd.f32 %v591, %v671
        %v688 = vpack.c.bf16 %v673, %v672
        %v689 = vpack.c.bf16 %v675, %v674
        %v690 = vpack.c.bf16 %v677, %v676
        %v691 = vpack.c.bf16 %v679, %v678
        %v692 = vpack.c.bf16 %v681, %v680
        %v693 = vpack.c.bf16 %v683, %v682
        %v694 = vpack.c.bf16 %v685, %v684
        %v695 = vpack.c.bf16 %v687, %v686
        %v696 = vld [vmem:[%s4] sm:$0xff]
        %v697 = vld [vmem:[%s4 + $0x8] sm:$0xff]
        %v698 = vld [vmem:[%s4 + $0x10] sm:$0xff]
        %v699 = vld [vmem:[%s4 + $0x18] sm:$0xff]
        %v700 = vld [vmem:[%s4 + $0x20] sm:$0xff]
        %v701 = vld [vmem:[%s4 + $0x28] sm:$0xff]
        %v702 = vld [vmem:[%s4 + $0x30] sm:$0xff]
        %v703 = vld [vmem:[%s4 + $0x38] sm:$0xff]
        %v704 = vld [vmem:[%s4 + $0x40] sm:$0xff]
        %v705 = vld [vmem:[%s4 + $0x48] sm:$0xff]
        %v706 = vld [vmem:[%s4 + $0x50] sm:$0xff]
        %v707 = vld [vmem:[%s4 + $0x58] sm:$0xff]
        %v708 = vld [vmem:[%s4 + $0x60] sm:$0xff]
        %v709 = vld [vmem:[%s4 + $0x68] sm:$0xff]
        %v710 = vld [vmem:[%s4 + $0x70] sm:$0xff]
        %v711 = vld [vmem:[%s4 + $0x78] sm:$0xff]
        %v712 = vld [vmem:[%s421] sm:$0xf]
        %v713 = vld [vmem:[%s421 + $0x4] sm:$0xf]
        %v714 = vld [vmem:[%s421 + $0x8] sm:$0xf]
        %v715 = vld [vmem:[%s421 + $0xc] sm:$0xf]
        %v716 = vld [vmem:[%s421 + $0x10] sm:$0xf]
        %v717 = vld [vmem:[%s421 + $0x14] sm:$0xf]
        %v718 = vld [vmem:[%s421 + $0x18] sm:$0xf]
        %v719 = vld [vmem:[%s421 + $0x1c] sm:$0xf]
        %v720 = vld [vmem:[%s421 + $0x20] sm:$0xf]
        %v721 = vld [vmem:[%s421 + $0x24] sm:$0xf]
        %v722 = vld [vmem:[%s421 + $0x28] sm:$0xf]
        %v723 = vld [vmem:[%s421 + $0x2c] sm:$0xf]
        %v724 = vld [vmem:[%s421 + $0x30] sm:$0xf]
        %v725 = vld [vmem:[%s421 + $0x34] sm:$0xf]
        %v726 = vld [vmem:[%s421 + $0x38] sm:$0xf]
        %v727 = vld [vmem:[%s421 + $0x3c] sm:$0xf]
        %v728 = vld [vmem:[#allocation4] sm:$0xff]
        %v729 = vld [vmem:[#allocation4 + $0x8] sm:$0xff]
        %v730 = vld [vmem:[#allocation4 + $0x10] sm:$0xff]
        %v731 = vld [vmem:[#allocation4 + $0x18] sm:$0xff]
        %v732 = vld [vmem:[#allocation4 + $0x20] sm:$0xff]
        %v733 = vld [vmem:[#allocation4 + $0x28] sm:$0xff]
        %v734 = vld [vmem:[#allocation4 + $0x30] sm:$0xff]
        %v735 = vld [vmem:[#allocation4 + $0x38] sm:$0xff]
        %v736 = vld [vmem:[#allocation4 + $0x40] sm:$0xff]
        %v737 = vld [vmem:[#allocation4 + $0x48] sm:$0xff]
        %v738 = vld [vmem:[#allocation4 + $0x50] sm:$0xff]
        %v739 = vld [vmem:[#allocation4 + $0x58] sm:$0xff]
        %v756 = vunpack.c.l.b16 %v712
        %v757 = vunpack.c.l.b16 %v713
        %v758 = vunpack.c.l.b16 %v714
        %v759 = vunpack.c.l.b16 %v715
        %v760 = vunpack.c.l.b16 %v716
        %v761 = vunpack.c.l.b16 %v717
        %v762 = vunpack.c.l.b16 %v718
        %v763 = vunpack.c.l.b16 %v719
        %v764 = vunpack.c.l.b16 %v720
        %v765 = vunpack.c.l.b16 %v721
        %v766 = vunpack.c.l.b16 %v722
        %v767 = vunpack.c.l.b16 %v723
        %v768 = vunpack.c.l.b16 %v724
        %v769 = vunpack.c.l.b16 %v725
        %v770 = vunpack.c.l.b16 %v726
        %v771 = vunpack.c.l.b16 %v727
        %v772 = vpack.c.b16 %v757, %v756
        %v773 = vpack.c.b16 %v759, %v758
        %v774 = vpack.c.b16 %v761, %v760
        %v775 = vpack.c.b16 %v763, %v762
        %v776 = vpack.c.b16 %v765, %v764
        %v777 = vpack.c.b16 %v767, %v766
        %v778 = vpack.c.b16 %v769, %v768
        %v779 = vpack.c.b16 %v771, %v770
        %v792 = vunpack.c.l.b16 %v728
        %v793 = vunpack.c.h.b16 %v728
        %v794 = vunpack.c.l.b16 %v729
        %v795 = vunpack.c.h.b16 %v729
        %v796 = vunpack.c.l.b16 %v730
        %v797 = vunpack.c.h.b16 %v730
        %v798 = vunpack.c.l.b16 %v731
        %v799 = vunpack.c.h.b16 %v731
        %v800 = vunpack.c.l.b16 %v732
        %v801 = vunpack.c.h.b16 %v732
        %v802 = vunpack.c.l.b16 %v733
        %v803 = vunpack.c.h.b16 %v733
        %v804 = vunpack.c.l.b16 %v734
        %v805 = vunpack.c.h.b16 %v734
        %v806 = vunpack.c.l.b16 %v735
        %v807 = vunpack.c.h.b16 %v735
        %v808 = vunpack.c.l.b16 %v736
        %v809 = vunpack.c.h.b16 %v736
        %v810 = vunpack.c.l.b16 %v737
        %v811 = vunpack.c.h.b16 %v737
        %v812 = vunpack.c.l.b16 %v738
        %v813 = vunpack.c.h.b16 %v738
        %v814 = vunpack.c.l.b16 %v739
        %v815 = vunpack.c.h.b16 %v739
        %v816 = vpack.c.b16 %v794, %v792
        %v817 = vpack.c.b16 %v795, %v793
        %v818 = vpack.c.b16 %v798, %v796
        %v819 = vpack.c.b16 %v799, %v797
        %v820 = vpack.c.b16 %v802, %v800
        %v821 = vpack.c.b16 %v803, %v801
        %v822 = vpack.c.b16 %v806, %v804
        %v823 = vpack.c.b16 %v807, %v805
        %v824 = vpack.c.b16 %v810, %v808
        %v825 = vpack.c.b16 %v811, %v809
        %v826 = vpack.c.b16 %v814, %v812
        %v827 = vpack.c.b16 %v815, %v813
        %vm840 = vcmask 785408
        %v842 = vsel %vm840, %v772, 0
        %v845 = vsel %vm840, %v773, 0
        %v848 = vsel %vm840, %v774, 0
        %v851 = vsel %vm840, %v775, 0
        %v854 = vsel %vm840, %v776, 0
        %v857 = vsel %vm840, %v777, 0
        %v860 = vsel %vm840, %v778, 0
        %v863 = vsel %vm840, %v779, 0
        %865 = vmatprep.subr.bf16.mxu0 %v817
        %866 = vmatpush1.bf16.msra.mxu0 %v816
        %867 = vmatprep.subr.bf16.mxu0 %v819
        %868 = vmatpush1.bf16.msra.mxu0 %v818
        %869 = vmatprep.subr.bf16.mxu0 %v821
        %870 = vmatpush1.bf16.msra.mxu0 %v820
        %871 = vmatprep.subr.bf16.mxu0 %v823
        %872 = vmatpush1.bf16.msra.mxu0 %v822
        %873 = vmatprep.subr.bf16.mxu0 %v825
        %874 = vmatpush1.bf16.msra.mxu0 %v824
        %875 = vmatprep.subr.bf16.mxu0 %v827
        %876 = vmatpush1.bf16.msra.mxu0 %v826
        %877 = vmatprep.subr.bf16.mxu0 0
        %878 = vmatpush1.bf16.msra.mxu0 0
        %879 = vmatprep.subr.bf16.mxu0 0
        %880 = vmatpush1.bf16.msra.mxu0 0
        %881 = vmatprep.subr.bf16.mxu0 0
        %882 = vmatpush1.bf16.msra.mxu0 0
        %883 = vmatprep.subr.bf16.mxu0 0
        %884 = vmatpush1.bf16.msra.mxu0 0
        %885 = vmatprep.subr.bf16.mxu0 0
        %886 = vmatpush1.bf16.msra.mxu0 0
        %887 = vmatprep.subr.bf16.mxu0 0
        %888 = vmatpush1.bf16.msra.mxu0 0
        %889 = vmatprep.subr.bf16.mxu0 0
        %890 = vmatpush1.bf16.msra.mxu0 0
        %891 = vmatprep.subr.bf16.mxu0 0
        %892 = vmatpush1.bf16.msra.mxu0 0
        %893 = vmatprep.subr.bf16.mxu0 0
        %894 = vmatpush1.bf16.msra.mxu0 0
        %895 = vmatprep.subr.bf16.mxu0 0
        %896 = vmatpush1.bf16.msra.mxu0 0
        %897 = vmatprep.mubr.bf16.mxu0 0
        %898 = vmatmul.mubr.bf16.gmra.mrb[0].mxu0 %v842
        %v899 = vpop.f32.mrb[0].mxu0
        %v900 = vadd.f32 0.0, %v899
        %v901 = vpop.f32.mrb[0].mxu0
        %v902 = vadd.f32 0.0, %v901
        %v903 = vpop.f32.mrb[0].mxu0
        %v904 = vadd.f32 0.0, %v903
        %v905 = vpop.f32.mrb[0].mxu0
        %v906 = vadd.f32 0.0, %v905
        %907 = vmatprep.mubr.bf16.mxu0 0
        %908 = vmatmul.mubr.bf16.gmra.mrb[0].mxu0 %v845
        %v909 = vpop.f32.mrb[0].mxu0
        %v910 = vadd.f32 0.0, %v909
        %v911 = vpop.f32.mrb[0].mxu0
        %v912 = vadd.f32 0.0, %v911
        %v913 = vpop.f32.mrb[0].mxu0
        %v914 = vadd.f32 0.0, %v913
        %v915 = vpop.f32.mrb[0].mxu0
        %v916 = vadd.f32 0.0, %v915
        %917 = vmatprep.mubr.bf16.mxu0 0
        %918 = vmatmul.mubr.bf16.gmra.mrb[0].mxu0 %v848
        %v919 = vpop.f32.mrb[0].mxu0
        %v920 = vadd.f32 0.0, %v919
        %v921 = vpop.f32.mrb[0].mxu0
        %v922 = vadd.f32 0.0, %v921
        %v923 = vpop.f32.mrb[0].mxu0
        %v924 = vadd.f32 0.0, %v923
        %v925 = vpop.f32.mrb[0].mxu0
        %v926 = vadd.f32 0.0, %v925
        %927 = vmatprep.mubr.bf16.mxu0 0
        %928 = vmatmul.mubr.bf16.gmra.mrb[0].mxu0 %v851
        %v929 = vpop.f32.mrb[0].mxu0
        %v930 = vadd.f32 0.0, %v929
        %v931 = vpop.f32.mrb[0].mxu0
        %v932 = vadd.f32 0.0, %v931
        %v933 = vpop.f32.mrb[0].mxu0
        %v934 = vadd.f32 0.0, %v933
        %v935 = vpop.f32.mrb[0].mxu0
        %v936 = vadd.f32 0.0, %v935
        %937 = vmatprep.mubr.bf16.mxu0 0
        %938 = vmatmul.mubr.bf16.gmra.mrb[0].mxu0 %v854
        %v939 = vpop.f32.mrb[0].mxu0
        %v940 = vadd.f32 0.0, %v939
        %v941 = vpop.f32.mrb[0].mxu0
        %v942 = vadd.f32 0.0, %v941
        %v943 = vpop.f32.mrb[0].mxu0
        %v944 = vadd.f32 0.0, %v943
        %v945 = vpop.f32.mrb[0].mxu0
        %v946 = vadd.f32 0.0, %v945
        %947 = vmatprep.mubr.bf16.mxu0 0
        %948 = vmatmul.mubr.bf16.gmra.mrb[0].mxu0 %v857
        %v949 = vpop.f32.mrb[0].mxu0
        %v950 = vadd.f32 0.0, %v949
        %v951 = vpop.f32.mrb[0].mxu0
        %v952 = vadd.f32 0.0, %v951
        %v953 = vpop.f32.mrb[0].mxu0
        %v954 = vadd.f32 0.0, %v953
        %v955 = vpop.f32.mrb[0].mxu0
        %v956 = vadd.f32 0.0, %v955
        %957 = vmatprep.mubr.bf16.mxu0 0
        %958 = vmatmul.mubr.bf16.gmra.mrb[0].mxu0 %v860
        %v959 = vpop.f32.mrb[0].mxu0
        %v960 = vadd.f32 0.0, %v959
        %v961 = vpop.f32.mrb[0].mxu0
        %v962 = vadd.f32 0.0, %v961
        %v963 = vpop.f32.mrb[0].mxu0
        %v964 = vadd.f32 0.0, %v963
        %v965 = vpop.f32.mrb[0].mxu0
        %v966 = vadd.f32 0.0, %v965
        %967 = vmatprep.mubr.bf16.mxu0 0
        %968 = vmatmul.mubr.bf16.gmra.mrb[0].mxu0 %v863
        %v969 = vpop.f32.mrb[0].mxu0
        %v970 = vadd.f32 0.0, %v969
        %v971 = vpop.f32.mrb[0].mxu0
        %v972 = vadd.f32 0.0, %v971
        %v973 = vpop.f32.mrb[0].mxu0
        %v974 = vadd.f32 0.0, %v973
        %v975 = vpop.f32.mrb[0].mxu0
        %v976 = vadd.f32 0.0, %v975
        %977 = vdwg.mxu0
        %v994 = vunpack.c.l.b16 %v696
        %v995 = vunpack.c.h.b16 %v696
        %v996 = vunpack.c.l.b16 %v697
        %v997 = vunpack.c.h.b16 %v697
        %v998 = vunpack.c.l.b16 %v698
        %v999 = vunpack.c.h.b16 %v698
        %v1000 = vunpack.c.l.b16 %v699
        %v1001 = vunpack.c.h.b16 %v699
        %v1002 = vunpack.c.l.b16 %v700
        %v1003 = vunpack.c.h.b16 %v700
        %v1004 = vunpack.c.l.b16 %v701
        %v1005 = vunpack.c.h.b16 %v701
        %v1006 = vunpack.c.l.b16 %v702
        %v1007 = vunpack.c.h.b16 %v702
        %v1008 = vunpack.c.l.b16 %v703
        %v1009 = vunpack.c.h.b16 %v703
        %v1010 = vunpack.c.l.b16 %v704
        %v1011 = vunpack.c.h.b16 %v704
        %v1012 = vunpack.c.l.b16 %v705
        %v1013 = vunpack.c.h.b16 %v705
        %v1014 = vunpack.c.l.b16 %v706
        %v1015 = vunpack.c.h.b16 %v706
        %v1016 = vunpack.c.l.b16 %v707
        %v1017 = vunpack.c.h.b16 %v707
        %v1018 = vunpack.c.l.b16 %v708
        %v1019 = vunpack.c.h.b16 %v708
        %v1020 = vunpack.c.l.b16 %v709
        %v1021 = vunpack.c.h.b16 %v709
        %v1022 = vunpack.c.l.b16 %v710
        %v1023 = vunpack.c.h.b16 %v710
        %v1024 = vunpack.c.l.b16 %v711
        %v1025 = vunpack.c.h.b16 %v711
        %v1026 = vpack.c.b16 %v996, %v994
        %v1027 = vpack.c.b16 %v997, %v995
        %v1028 = vpack.c.b16 %v1000, %v998
        %v1029 = vpack.c.b16 %v1001, %v999
        %v1030 = vpack.c.b16 %v1004, %v1002
        %v1031 = vpack.c.b16 %v1005, %v1003
        %v1032 = vpack.c.b16 %v1008, %v1006
        %v1033 = vpack.c.b16 %v1009, %v1007
        %v1034 = vpack.c.b16 %v1012, %v1010
        %v1035 = vpack.c.b16 %v1013, %v1011
        %v1036 = vpack.c.b16 %v1016, %v1014
        %v1037 = vpack.c.b16 %v1017, %v1015
        %v1038 = vpack.c.b16 %v1020, %v1018
        %v1039 = vpack.c.b16 %v1021, %v1019
        %v1040 = vpack.c.b16 %v1024, %v1022
        %v1041 = vpack.c.b16 %v1025, %v1023
        %1058 = vmatprep.subr.bf16.mxu0 %v1027
        %1059 = vmatpush1.bf16.msra.mxu0 %v1026
        %1060 = vmatprep.subr.bf16.mxu0 %v1029
        %1061 = vmatpush1.bf16.msra.mxu0 %v1028
        %1062 = vmatprep.subr.bf16.mxu0 %v1031
        %1063 = vmatpush1.bf16.msra.mxu0 %v1030
        %1064 = vmatprep.subr.bf16.mxu0 %v1033
        %1065 = vmatpush1.bf16.msra.mxu0 %v1032
        %1066 = vmatprep.subr.bf16.mxu0 %v1035
        %1067 = vmatpush1.bf16.msra.mxu0 %v1034
        %1068 = vmatprep.subr.bf16.mxu0 %v1037
        %1069 = vmatpush1.bf16.msra.mxu0 %v1036
        %1070 = vmatprep.subr.bf16.mxu0 %v1039
        %1071 = vmatpush1.bf16.msra.mxu0 %v1038
        %1072 = vmatprep.subr.bf16.mxu0 %v1041
        %1073 = vmatpush1.bf16.msra.mxu0 %v1040
        %1074 = vmatprep.subr.bf16.mxu0 0
        %1075 = vmatpush1.bf16.msra.mxu0 0
        %1076 = vmatprep.subr.bf16.mxu0 0
        %1077 = vmatpush1.bf16.msra.mxu0 0
        %1078 = vmatprep.subr.bf16.mxu0 0
        %1079 = vmatpush1.bf16.msra.mxu0 0
        %1080 = vmatprep.subr.bf16.mxu0 0
        %1081 = vmatpush1.bf16.msra.mxu0 0
        %1082 = vmatprep.subr.bf16.mxu0 0
        %1083 = vmatpush1.bf16.msra.mxu0 0
        %1084 = vmatprep.subr.bf16.mxu0 0
        %1085 = vmatpush1.bf16.msra.mxu0 0
        %1086 = vmatprep.subr.bf16.mxu0 0
        %1087 = vmatpush1.bf16.msra.mxu0 0
        %1088 = vmatprep.subr.bf16.mxu0 0
        %1089 = vmatpush1.bf16.msra.mxu0 0
        %1090 = vmatprep.mubr.bf16.mxu0 0
        %1091 = vmatmul.mubr.bf16.gmra.mrb[0].mxu0 %v688
        %v1092 = vpop.f32.mrb[0].mxu0
        %v1093 = vadd.f32 %v900, %v1092
        %v1094 = vpop.f32.mrb[0].mxu0
        %v1095 = vadd.f32 %v902, %v1094
        %v1096 = vpop.f32.mrb[0].mxu0
        %v1097 = vadd.f32 %v904, %v1096
        %v1098 = vpop.f32.mrb[0].mxu0
        %v1099 = vadd.f32 %v906, %v1098
        %1100 = vmatprep.mubr.bf16.mxu0 0
        %1101 = vmatmul.mubr.bf16.gmra.mrb[0].mxu0 %v689
        %v1102 = vpop.f32.mrb[0].mxu0
        %v1103 = vadd.f32 %v910, %v1102
        %v1104 = vpop.f32.mrb[0].mxu0
        %v1105 = vadd.f32 %v912, %v1104
        %v1106 = vpop.f32.mrb[0].mxu0
        %v1107 = vadd.f32 %v914, %v1106
        %v1108 = vpop.f32.mrb[0].mxu0
        %v1109 = vadd.f32 %v916, %v1108
        %1110 = vmatprep.mubr.bf16.mxu0 0
        %1111 = vmatmul.mubr.bf16.gmra.mrb[0].mxu0 %v690
        %v1112 = vpop.f32.mrb[0].mxu0
        %v1113 = vadd.f32 %v920, %v1112
        %v1114 = vpop.f32.mrb[0].mxu0
        %v1115 = vadd.f32 %v922, %v1114
        %v1116 = vpop.f32.mrb[0].mxu0
        %v1117 = vadd.f32 %v924, %v1116
        %v1118 = vpop.f32.mrb[0].mxu0
        %v1119 = vadd.f32 %v926, %v1118
        %1120 = vmatprep.mubr.bf16.mxu0 0
        %1121 = vmatmul.mubr.bf16.gmra.mrb[0].mxu0 %v691
        %v1122 = vpop.f32.mrb[0].mxu0
        %v1123 = vadd.f32 %v930, %v1122
        %v1124 = vpop.f32.mrb[0].mxu0
        %v1125 = vadd.f32 %v932, %v1124
        %v1126 = vpop.f32.mrb[0].mxu0
        %v1127 = vadd.f32 %v934, %v1126
        %v1128 = vpop.f32.mrb[0].mxu0
        %v1129 = vadd.f32 %v936, %v1128
        %1130 = vmatprep.mubr.bf16.mxu0 0
        %1131 = vmatmul.mubr.bf16.gmra.mrb[0].mxu0 %v692
        %v1132 = vpop.f32.mrb[0].mxu0
        %v1133 = vadd.f32 %v940, %v1132
        %v1134 = vpop.f32.mrb[0].mxu0
        %v1135 = vadd.f32 %v942, %v1134
        %v1136 = vpop.f32.mrb[0].mxu0
        %v1137 = vadd.f32 %v944, %v1136
        %v1138 = vpop.f32.mrb[0].mxu0
        %v1139 = vadd.f32 %v946, %v1138
        %1140 = vmatprep.mubr.bf16.mxu0 0
        %1141 = vmatmul.mubr.bf16.gmra.mrb[0].mxu0 %v693
        %v1142 = vpop.f32.mrb[0].mxu0
        %v1143 = vadd.f32 %v950, %v1142
        %v1144 = vpop.f32.mrb[0].mxu0
        %v1145 = vadd.f32 %v952, %v1144
        %v1146 = vpop.f32.mrb[0].mxu0
        %v1147 = vadd.f32 %v954, %v1146
        %v1148 = vpop.f32.mrb[0].mxu0
        %v1149 = vadd.f32 %v956, %v1148
        %1150 = vmatprep.mubr.bf16.mxu0 0
        %1151 = vmatmul.mubr.bf16.gmra.mrb[0].mxu0 %v694
        %v1152 = vpop.f32.mrb[0].mxu0
        %v1153 = vadd.f32 %v960, %v1152
        %v1154 = vpop.f32.mrb[0].mxu0
        %v1155 = vadd.f32 %v962, %v1154
        %v1156 = vpop.f32.mrb[0].mxu0
        %v1157 = vadd.f32 %v964, %v1156
        %v1158 = vpop.f32.mrb[0].mxu0
        %v1159 = vadd.f32 %v966, %v1158
        %1160 = vmatprep.mubr.bf16.mxu0 0
        %1161 = vmatmul.mubr.bf16.gmra.mrb[0].mxu0 %v695
        %v1162 = vpop.f32.mrb[0].mxu0
        %v1163 = vadd.f32 %v970, %v1162
        %v1164 = vpop.f32.mrb[0].mxu0
        %v1165 = vadd.f32 %v972, %v1164
        %v1166 = vpop.f32.mrb[0].mxu0
        %v1167 = vadd.f32 %v974, %v1166
        %v1168 = vpop.f32.mrb[0].mxu0
        %v1169 = vadd.f32 %v976, %v1168
        %1170 = vdwg.mxu0
        %v1171 = vsub.f32 %v1093, %v464
        %v1172 = vsub.f32 %v1097, %v465
        %v1173 = vsub.f32 %v1103, %v466
        %v1174 = vsub.f32 %v1107, %v467
        %v1175 = vsub.f32 %v1113, %v468
        %v1176 = vsub.f32 %v1117, %v469
        %v1177 = vsub.f32 %v1123, %v470
        %v1178 = vsub.f32 %v1127, %v471
        %v1179 = vsub.f32 %v1133, %v472
        %v1180 = vsub.f32 %v1137, %v473
        %v1181 = vsub.f32 %v1143, %v474
        %v1182 = vsub.f32 %v1147, %v475
        %v1183 = vsub.f32 %v1153, %v476
        %v1184 = vsub.f32 %v1157, %v477
        %v1185 = vsub.f32 %v1163, %v478
        %v1186 = vsub.f32 %v1167, %v479
        %v1187 = vsub.f32 %v1095, %v464
        %v1188 = vsub.f32 %v1099, %v465
        %v1189 = vsub.f32 %v1105, %v466
        %v1190 = vsub.f32 %v1109, %v467
        %v1191 = vsub.f32 %v1115, %v468
        %v1192 = vsub.f32 %v1119, %v469
        %v1193 = vsub.f32 %v1125, %v470
        %v1194 = vsub.f32 %v1129, %v471
        %v1195 = vsub.f32 %v1135, %v472
        %v1196 = vsub.f32 %v1139, %v473
        %v1197 = vsub.f32 %v1145, %v474
        %v1198 = vsub.f32 %v1149, %v475
        %v1199 = vsub.f32 %v1155, %v476
        %v1200 = vsub.f32 %v1159, %v477
        %v1201 = vsub.f32 %v1165, %v478
        %v1202 = vsub.f32 %v1169, %v479
        %v1203 = vld [vmem:[#allocation2] sm:$0x1]
        %v1204 = vmul.f32 %v1171, %v1171
        %v1205 = vmul.f32 %v1172, %v1172
        %v1206 = vmul.f32 %v1173, %v1173
        %v1207 = vmul.f32 %v1174, %v1174
        %v1208 = vmul.f32 %v1175, %v1175
        %v1209 = vmul.f32 %v1176, %v1176
        %v1210 = vmul.f32 %v1177, %v1177
        %v1211 = vmul.f32 %v1178, %v1178
        %v1212 = vmul.f32 %v1179, %v1179
        %v1213 = vmul.f32 %v1180, %v1180
        %v1214 = vmul.f32 %v1181, %v1181
        %v1215 = vmul.f32 %v1182, %v1182
        %v1216 = vmul.f32 %v1183, %v1183
        %v1217 = vmul.f32 %v1184, %v1184
        %v1218 = vmul.f32 %v1185, %v1185
        %v1219 = vmul.f32 %v1186, %v1186
        %v1220 = vadd.f32 %v1204, %v1205
        %v1221 = vadd.f32 %v1220, %v1206
        %v1222 = vadd.f32 %v1221, %v1207
        %v1223 = vadd.f32 %v1222, %v1208
        %v1224 = vadd.f32 %v1223, %v1209
        %v1225 = vadd.f32 %v1224, %v1210
        %v1226 = vadd.f32 %v1225, %v1211
        %v1227 = vadd.f32 %v1226, %v1212
        %v1228 = vadd.f32 %v1227, %v1213
        %v1229 = vadd.f32 %v1228, %v1214
        %v1230 = vadd.f32 %v1229, %v1215
        %v1231 = vadd.f32 %v1230, %v1216
        %v1232 = vadd.f32 %v1231, %v1217
        %v1233 = vadd.f32 %v1232, %v1218
        %v1234 = vadd.f32 %v1233, %v1219
        %v1235 = vrot.slane %v1234, 4
        %v1236 = vadd.f32 %v1234, %v1235
        %v1237 = vrot.slane %v1236, 2
        %v1238 = vadd.f32 %v1236, %v1237
        %v1239 = vrot.slane %v1238, 1
        %v1240 = vadd.f32 %v1238, %v1239
        %v1241 = vadd.f32 %v1203, %v1240
        %1242 = vst [vmem:[#allocation2] sm:$0x1] %v1241
        %v1243 = vld [vmem:[#allocation3] sm:$0x1]
        %v1244 = vmul.f32 %v1187, %v1187
        %v1245 = vmul.f32 %v1188, %v1188
        %v1246 = vmul.f32 %v1189, %v1189
        %v1247 = vmul.f32 %v1190, %v1190
        %v1248 = vmul.f32 %v1191, %v1191
        %v1249 = vmul.f32 %v1192, %v1192
        %v1250 = vmul.f32 %v1193, %v1193
        %v1251 = vmul.f32 %v1194, %v1194
        %v1252 = vmul.f32 %v1195, %v1195
        %v1253 = vmul.f32 %v1196, %v1196
        %v1254 = vmul.f32 %v1197, %v1197
        %v1255 = vmul.f32 %v1198, %v1198
        %v1256 = vmul.f32 %v1199, %v1199
        %v1257 = vmul.f32 %v1200, %v1200
        %v1258 = vmul.f32 %v1201, %v1201
        %v1259 = vmul.f32 %v1202, %v1202
        %v1260 = vadd.f32 %v1244, %v1245
        %v1261 = vadd.f32 %v1260, %v1246
        %v1262 = vadd.f32 %v1261, %v1247
        %v1263 = vadd.f32 %v1262, %v1248
        %v1264 = vadd.f32 %v1263, %v1249
        %v1265 = vadd.f32 %v1264, %v1250
        %v1266 = vadd.f32 %v1265, %v1251
        %v1267 = vadd.f32 %v1266, %v1252
        %v1268 = vadd.f32 %v1267, %v1253
        %v1269 = vadd.f32 %v1268, %v1254
        %v1270 = vadd.f32 %v1269, %v1255
        %v1271 = vadd.f32 %v1270, %v1256
        %v1272 = vadd.f32 %v1271, %v1257
        %v1273 = vadd.f32 %v1272, %v1258
        %v1274 = vadd.f32 %v1273, %v1259
        %v1275 = vrot.slane %v1274, 4
        %v1276 = vadd.f32 %v1274, %v1275
        %v1277 = vrot.slane %v1276, 2
        %v1278 = vadd.f32 %v1276, %v1277
        %v1279 = vrot.slane %v1278, 1
        %v1280 = vadd.f32 %v1278, %v1279
        %v1281 = vadd.f32 %v1243, %v1280
        %1282 = vst [vmem:[#allocation3] sm:$0x1] %v1281
        %p1283 = scmp.eq.s32.totalorder %s27, 3
        // Predicated region
        $region53: #{tpu_custom_call.1} parent=43 // pred_check
          %p1284 = pneg %p1283
        $region54: #{tpu_custom_call.1} parent=43 // pred_check_branch
          %1286 = sbr.rel (%p1284) target = $region56
        $region55: #{tpu_custom_call.1} parent=43 // pred_region
          %v1287 = vld [vmem:[#allocation2] sm:$0x1]
          %vm1288 = vcmask 1040384
          %v1289 = vsel %vm1288, %v1287, 0.0
          %1290 = vadd.xlane.f32.xlu0 %v1289
          %v1291 = vpop.xlane.xlu0 %1290
          %v1292 = vrot.slane %v1291, 4
          %v1293 = vadd.f32 %v1291, %v1292
          %v1294 = vrot.slane %v1293, 2
          %v1295 = vadd.f32 %v1293, %v1294
          %v1296 = vrot.slane %v1295, 1
          %v1297 = vadd.f32 %v1295, %v1296
          %s1298 = vtos %v1297
          %v1299 = vstv %s1298
          %vm1300 = vcmask 0
          %1301 = vst.msk [vmem:[#allocation7] sm:$0x1] %vm1300, %v1299
          %v1302 = vld [vmem:[#allocation3] sm:$0x1]
          %v1303 = vsel %vm1288, %v1302, 0.0
          %1304 = vadd.xlane.f32.xlu0 %v1303
          %v1305 = vpop.xlane.xlu0 %1304
          %v1306 = vrot.slane %v1305, 4
          %v1307 = vadd.f32 %v1305, %v1306
          %v1308 = vrot.slane %v1307, 2
          %v1309 = vadd.f32 %v1307, %v1308
          %v1310 = vrot.slane %v1309, 1
          %v1311 = vadd.f32 %v1309, %v1310
          %s1312 = vtos %v1311
          %v1313 = vstv %s1312
          %1314 = vst.msk [vmem:[#allocation8] sm:$0x1] %vm1300, %v1313
        $region56: #{tpu_custom_call.1} parent=43 // pred_fallthru
          _
        // Predicated region
        $region57: #{tpu_custom_call.1} parent=43 // pred_check
          %p1315 = pneg %p214
        $region58: #{tpu_custom_call.1} parent=43 // pred_check_branch
          %1317 = sbr.rel (%p1315) target = $region60
        $region59: #{tpu_custom_call.1} parent=43 // pred_region
          %s1319 = ssub.s32 16, 16
          %1320 = vsyncadd [#allocation6], %s1319
          %s1321 = smul.addr %s26, 16
          %s1322 = scalar_lea.hbm %s6, %s1321
          %s1324 = sshll.u32 [#allocation7], 4
          %s1325 = int_to_ptr.vmem [resolvable:$true] %s1324
          %1327 = dma.vmem_to_hbm [thread:$0]  %s1325, 16, %s1322, [#allocation6]
        $region60: #{tpu_custom_call.1} parent=43 // pred_fallthru
          _
        // Predicated region
        $region61: #{tpu_custom_call.1} parent=43 // pred_check
          %p1328 = pneg %p240
        $region62: #{tpu_custom_call.1} parent=43 // pred_check_branch
          %1330 = sbr.rel (%p1328) target = $region64
        $region63: #{tpu_custom_call.1} parent=43 // pred_region
          %s1332 = ssub.s32 16, 16
          %1333 = vsyncadd [#allocation9], %s1332
          %s1334 = smul.addr %s26, 16
          %s1335 = scalar_lea.hbm %s7, %s1334
          %s1337 = sshll.u32 [#allocation8], 4
          %s1338 = int_to_ptr.vmem [resolvable:$true] %s1337
          %1340 = dma.vmem_to_hbm [thread:$0]  %s1338, 16, %s1335, [#allocation9]
        $region64: #{tpu_custom_call.1} parent=43 // pred_fallthru
          _
        // Predicated region
        $region65: #{tpu_custom_call.1} parent=43 // pred_check
          %p1341 = pneg %p214
        $region66: #{tpu_custom_call.1} parent=43 // pred_check_branch
          %1343 = sbr.rel (%p1341) target = $region68
        $region67: #{tpu_custom_call.1} parent=43 // pred_region
          %1344 = dma.done [#allocation6], 16
        $region68: #{tpu_custom_call.1} parent=43 // pred_fallthru
          _
        // Predicated region
        $region69: #{tpu_custom_call.1} parent=43 // pred_check
          %p1345 = pneg %p240
        $region70: #{tpu_custom_call.1} parent=43 // pred_check_branch
          %1347 = sbr.rel (%p1345) target = $region72
        $region71: #{tpu_custom_call.1} parent=43 // pred_region
          %1348 = dma.done [#allocation9], 16
        $region72: #{tpu_custom_call.1} parent=43 // pred_fallthru
          _
      $region44: #{tpu_custom_call.1} parent=5 // pred_fallthru
        _
      %p1349 = scmp.le.s32.totalorder 2, %s17
      // Predicated region
      $region73: #{tpu_custom_call.1} parent=5 // pred_check
        %p1350 = pneg %p1349
      $region74: #{tpu_custom_call.1} parent=5 // pred_check_branch
        %1352 = sbr.rel (%p1350) target = $region76
      $region75: #{tpu_custom_call.1} parent=5 // pred_region
        %s1353 = ssub.s32 %s17, 2
      $region76: #{tpu_custom_call.1} parent=5 // pred_fallthru
        _
    $region6: #{tpu_custom_call.1} parent=1 // loop_footer
      %s21 = sadd.s32 1, %s17
    $region7: #{tpu_custom_call.1} parent=1 // loop_footer_branch
      %16 = sbr.rel target = $region3
    $region8: #{tpu_custom_call.1} parent=1 // loop_exit
      _
    %1354 = vsyncpa [#allocation5], 1
    %s1355 = scalar_lea.sflag [#allocation5], 1
    %1356 = vsyncpa %s1355, 1
    %1357 = vsyncpa [#allocation6], 1
    %s1358 = scalar_lea.sflag [#allocation6], 1
    %1359 = vsyncpa %s1358, 1
    %1360 = vsyncpa [#allocation9], 1

</llo_original>
